<compile_context>
chip_gen: v7x
topology: tpu7x:2x2x1
jax: 0.10.0
libtpu: 0.0.40
codegen_flags: <defaults>
</compile_context>

<pallas_src>
import numpy as np
import jax
import jax.numpy as jnp
from jax import lax
from jax.experimental import pallas as pl
from jax.experimental.pallas import tpu as pltpu


# ----------------------------------------------------------------------------
# Fused kernel factory (static geometry captured by closure).
# ----------------------------------------------------------------------------
def _make_up_kernel(*, Wp, Sp, M, NB, S1, Coutu, C2, C1in, Cmid):
    NSp = NB * Sp
    E = NSp + 2 * M
    f32 = jnp.float32

    def kernel(x1_ref, x2_ref, wup_ref, bup_ref, gup_ref,
               w1_ref, s1_ref, b1_ref, w2_ref, s2_ref, b2_ref, mask_ref,
               o_ref,
               ycat_ref, xext1_ref, p1_ref, xext2_ref, p2_ref):
        # Only the halo margins ever need zeros; the interior [M, M+NSp) of
        # both padded-flat scratches is fully rewritten every grid step, so
        # the v1 full-scratch memsets are gone.  Zeroing the margins each
        # step keeps the kernel safe under "parallel" megacore splitting.
        xext1_ref[:, 0:M] = jnp.zeros((C1in, M), f32)
        xext1_ref[:, E - M:E] = jnp.zeros((C1in, M), f32)
        xext2_ref[:, 0:M] = jnp.zeros((Cmid, M), f32)
        xext2_ref[:, E - M:E] = jnp.zeros((Cmid, M), f32)

        # ---- ConvTranspose2d(k=2, s=2) -------------------------------------
        # One (4*Coutu, Cin) x (Cin, NB*S1) matmul for all batch elements and
        # all 4 taps, then ONE merged K = 4*S1 scatter matmul that drops each
        # tap at its (2h+kh, 2w+kw) slot of the zero-padded conv1 input grid
        # (this also realises F.pad).  The tap-major rows of y are re-laid
        # out into per-(batch, tap) lane blocks via a small VMEM scratch.
        y = jnp.dot(wup_ref[...], x1_ref[...].astype(f32),
                    preferred_element_type=f32) + bup_ref[...]
        for b in range(NB):
            for t in range(4):
                ycat_ref[b * Coutu:(b + 1) * Coutu, t * S1:(t + 1) * S1] = (
                    y[t * Coutu:(t + 1) * Coutu, b * S1:(b + 1) * S1])
        # TODO(synk): at production feature-map sizes replace this scatter
        # matmul (g_up is O(4*S1*Sp)) with direct strided-lane stores of the
        # deconv taps into the scratch interior.
        x1u = jnp.dot(ycat_ref[...], gup_ref[...],
                      preferred_element_type=f32)          # (NB*Coutu, Sp)

        # ---- conv1 input: channel-concat(x2, up(x1)) as row-block stores ----
        # x2 arrives already padded-flat from the wrapper (no g_x2 matmul).
        xext1_ref[0:C2, M:M + NSp] = x2_ref[...].astype(f32)
        for b in range(NB):
            xext1_ref[C2:C1in, M + b * Sp:M + (b + 1) * Sp] = (
                x1u[b * Coutu:(b + 1) * Coutu, :])

        def conv3x3_bn_relu(xext_ref, p_ref, c_in, w_ref, s_ref, b_ref):
            # 9 constant-lane-shift taps sliced straight from the extended
            # scratch ref into the im2col buffer, ONE matmul with K = 9*c_in,
            # then the folded BatchNorm affine + ReLU.
            for dy in range(3):
                for dx in range(3):
                    t = dy * 3 + dx
                    src = M + (dy - 1) * Wp + (dx - 1)
                    p_ref[t * c_in:(t + 1) * c_in, :] = xext_ref[:, src:src + NSp]
            acc = jnp.dot(w_ref[...], p_ref[...], preferred_element_type=f32)
            return jnp.maximum(acc * s_ref[...] + b_ref[...], 0.0)

        h1 = conv3x3_bn_relu(xext1_ref, p1_ref, C1in, w1_ref, s1_ref, b1_ref)
        h1 = h1 * mask_ref[...]              # re-zero the halo ring for conv2

        xext2_ref[:, M:M + NSp] = h1
        h2 = conv3x3_bn_relu(xext2_ref, p2_ref, Cmid, w2_ref, s2_ref, b2_ref)

        # Padded-flat output; the wrapper slices the interior (no gather
        # matmul).  Halo columns hold don't-care (finite) values.
        o_ref[...] = h2.astype(o_ref.dtype)

    return kernel


# ----------------------------------------------------------------------------
# Up.forward (NCHW in / NCHW out) -- single fused pallas_call.
# ----------------------------------------------------------------------------
def up_forward(x1_nchw, x2_nchw, p, eps=1e-5, batch_group=None):
    N, Cin1, H1, W1 = x1_nchw.shape
    N2, C2, H2, W2 = x2_nchw.shape
    assert N == N2
    Coutu = p['up_w'].shape[1]
    Cmid = p['c1_w'].shape[0]
    Cout = p['c2_w'].shape[0]
    C1in = C2 + Coutu
    assert p['c1_w'].shape[1] == C1in

    diffY = H2 - 2 * H1
    diffX = W2 - 2 * W1
    assert diffY >= 0 and diffX >= 0, "negative pad (crop) not supported"
    py, px = diffY // 2, diffX // 2

    # Batch folding: NB batch elements per grid step, stacked on the lane
    # axis.  Default folds the whole batch into one step (best for v5e/v6e);
    # on v7x (2 TensorCores) pick batch_group = N // 2 for larger N so the
    # parallel grid axis has >= 2 iterations.
    NB = N if batch_group is None else batch_group
    assert N % NB == 0
    NG = N // NB

    S1 = H1 * W1
    Hp, Wp = H2 + 2, W2 + 2
    Sp = Hp * Wp
    NSp = NB * Sp
    M = ((Wp + 1 + 127) // 128) * 128      # 128-aligned halo margin >= Wp+1
    E = NSp + 2 * M

    # ---- static 0/1 scatter matrix for the MERGED deconv-tap scatter -------
    g_up = np.zeros((4, S1, Sp), np.float32)
    for kh in range(2):
        for kw in range(2):
            t = kh * 2 + kw
            for h in range(H1):
                r = 1 + py + 2 * h + kh
                for w in range(W1):
                    q = 1 + px + 2 * w + kw
                    g_up[t, h * W1 + w, r * Wp + q] = 1.0
    g_up = g_up.reshape(4 * S1, Sp)

    # interior (= real pixel) mask over the padded-flat grid, tiled over NB
    m1 = np.zeros((Hp, Wp), np.float32)
    m1[1:1 + H2, 1:1 + W2] = 1.0
    mask = np.tile(m1.reshape(1, Sp), (1, NB))

    # ---- weight packing -----------------------------------------------------
    # ConvTranspose2d weight (Cin, Cout, 2, 2) -> rows ordered (kh, kw, oc).
    w_up = jnp.transpose(p['up_w'], (2, 3, 1, 0)).reshape(4 * Coutu, Cin1)
    b_up = jnp.tile(p['up_b'], 4).reshape(4 * Coutu, 1)

    def fold_bn(w_oihw, conv_b, gamma, beta, rmean, rvar):
        o = w_oihw.shape[0]
        # (O, I, 3, 3) -> (O, 3, 3, I) -> (O, 9*I); columns ordered (dy, dx, c)
        w_mat = jnp.transpose(w_oihw, (0, 2, 3, 1)).reshape(o, -1)
        s = gamma / jnp.sqrt(rvar + eps)
        b = (conv_b - rmean) * s + beta
        return w_mat, s.reshape(o, 1), b.reshape(o, 1)

    # TODO(synk): BatchNorm2d is applied in inference mode (running stats)
    # folded into a per-channel affine; PyTorch-default training-mode batch
    # statistics (a cross-batch reduction) are not computed.
    w1, s1, b1 = fold_bn(p['c1_w'], p['c1_b'], p['bn1_g'], p['bn1_b'],
                         p['bn1_m'], p['bn1_v'])
    w2, s2, b2 = fold_bn(p['c2_w'], p['c2_b'], p['bn2_g'], p['bn2_b'],
                         p['bn2_m'], p['bn2_v'])

    # ---- input layout: (batch-group, channels, NB*flat_spatial) ------------
    # x2 is pre-padded to the padded-flat layout here (one cheap XLA pad),
    # which deletes the v1 g_x2 embedding matmul and its quadratic constant.
    x1f = (x1_nchw.reshape(NG, NB, Cin1, S1)
           .transpose(0, 2, 1, 3).reshape(NG, Cin1, NB * S1))
    x2p = jnp.pad(x2_nchw, ((0, 0), (0, 0), (1, 1), (1, 1)))
    x2f = (x2p.reshape(NG, NB, C2, Sp)
           .transpose(0, 2, 1, 3).reshape(NG, C2, NSp))

    kernel = _make_up_kernel(Wp=Wp, Sp=Sp, M=M, NB=NB, S1=S1,
                             Coutu=Coutu, C2=C2, C1in=C1in, Cmid=Cmid)

    # TODO(synk): for production-size UNet feature maps: (a) add a row-strip
    # spatial grid axis with a 1-row halo, sized against v7x's 64 MiB VMEM;
    # (b) cast activations / folded weights to bf16 on v6e/v7x (keep f32
    # accumulation); (c) single-buffer the grid-invariant weight operands
    # (pipeline_mode=pl.Buffered(1)) once NG > 1.  Kept f32 / fully resident
    # here to hold the 1e-4 parity tolerance at these tiny shapes.
    out_pf = pl.pallas_call(
        kernel,
        out_shape=jax.ShapeDtypeStruct((NG, Cout, NSp), x1_nchw.dtype),
        grid=(NG,),
        in_specs=[
            pl.BlockSpec((None, Cin1, NB * S1), lambda g: (g, 0, 0)),
            pl.BlockSpec((None, C2, NSp), lambda g: (g, 0, 0)),
            pl.BlockSpec((4 * Coutu, Cin1), lambda g: (0, 0)),
            pl.BlockSpec((4 * Coutu, 1), lambda g: (0, 0)),
            pl.BlockSpec((4 * S1, Sp), lambda g: (0, 0)),
            pl.BlockSpec((Cmid, 9 * C1in), lambda g: (0, 0)),
            pl.BlockSpec((Cmid, 1), lambda g: (0, 0)),
            pl.BlockSpec((Cmid, 1), lambda g: (0, 0)),
            pl.BlockSpec((Cout, 9 * Cmid), lambda g: (0, 0)),
            pl.BlockSpec((Cout, 1), lambda g: (0, 0)),
            pl.BlockSpec((Cout, 1), lambda g: (0, 0)),
            pl.BlockSpec((1, NSp), lambda g: (0, 0)),
        ],
        out_specs=pl.BlockSpec((None, Cout, NSp), lambda g: (g, 0, 0)),
        scratch_shapes=[
            pltpu.VMEM((NB * Coutu, 4 * S1), jnp.float32),   # deconv tap relayout
            pltpu.VMEM((C1in, E), jnp.float32),              # padded-flat conv1 input
            pltpu.VMEM((9 * C1in, NSp), jnp.float32),        # conv1 im2col buffer
            pltpu.VMEM((Cmid, E), jnp.float32),              # padded-flat conv2 input
            pltpu.VMEM((9 * Cmid, NSp), jnp.float32),        # conv2 im2col buffer
        ],
        compiler_params=pltpu.CompilerParams(
            dimension_semantics=("parallel",),
            vmem_limit_bytes=32 * 1024 * 1024),
    )(x1f, x2f, w_up, b_up, jnp.asarray(g_up),
      w1, s1, b1, w2, s2, b2, jnp.asarray(mask))

    # interior slice back to NCHW (replaces v1's g_out gather matmul).
    out = out_pf.reshape(NG, Cout, NB, Hp, Wp)[:, :, :, 1:1 + H2, 1:1 + W2]
    return out.transpose(0, 2, 1, 3, 4).reshape(N, Cout, H2, W2)


# ----------------------------------------------------------------------------
# Pure-JAX reference (NCHW, torch semantics) for validation.
# ----------------------------------------------------------------------------
def up_forward_ref(x1, x2, p, eps=1e-5):
    N, Cin, H, W = x1.shape
    Cout = p['up_w'].shape[1]
    y = jnp.einsum('nchw,cokl->nohkwl', x1, p['up_w'])
    y = y.reshape(N, Cout, 2 * H, 2 * W) + p['up_b'][None, :, None, None]
    diffY = x2.shape[2] - y.shape[2]
    diffX = x2.shape[3] - y.shape[3]
    y = jnp.pad(y, ((0, 0), (0, 0),
                    (diffY // 2, diffY - diffY // 2),
                    (diffX // 2, diffX - diffX // 2)))
    x = jnp.concatenate([x2, y], axis=1)

    def cbr(x, w, b, g, be, m, v):
        z = lax.conv_general_dilated(x, w, (1, 1), ((1, 1), (1, 1)),
                                     dimension_numbers=('NCHW', 'OIHW', 'NCHW'))
        z = z + b[None, :, None, None]
        z = (z - m[None, :, None, None]) / jnp.sqrt(v[None, :, None, None] + eps)
        z = z * g[None, :, None, None] + be[None, :, None, None]
        return jnp.maximum(z, 0.0)

    h = cbr(x, p['c1_w'], p['c1_b'], p['bn1_g'], p['bn1_b'], p['bn1_m'], p['bn1_v'])
    h = cbr(h, p['c2_w'], p['c2_b'], p['bn2_g'], p['bn2_b'], p['bn2_m'], p['bn2_v'])
    return h


if __name__ == "__main__":
    in_ch, out_ch = 8, 4          # Up(in_ch=8, out_ch=4, bilinear=False)
    mid_ch = out_ch
    N, H1, W1 = 2, 8, 8           # x1: (N, in_ch, 8, 8)
    H2, W2 = 16, 16               # x2: (N, in_ch - out_ch, 16, 16)

    key = jax.random.PRNGKey(0)
    ks = jax.random.split(key, 16)

    params = {
        'up_w': 0.1 * jax.random.normal(ks[0], (in_ch, out_ch, 2, 2), jnp.float32),
        'up_b': 0.1 * jax.random.normal(ks[1], (out_ch,), jnp.float32),
        'c1_w': 0.1 * jax.random.normal(ks[2], (mid_ch, in_ch, 3, 3), jnp.float32),
        'c1_b': 0.1 * jax.random.normal(ks[3], (mid_ch,), jnp.float32),
        'bn1_g': 1.0 + 0.1 * jax.random.normal(ks[4], (mid_ch,), jnp.float32),
        'bn1_b': 0.1 * jax.random.normal(ks[5], (mid_ch,), jnp.float32),
        'bn1_m': 0.1 * jax.random.normal(ks[6], (mid_ch,), jnp.float32),
        'bn1_v': 1.0 + 0.1 * jnp.abs(jax.random.normal(ks[7], (mid_ch,), jnp.float32)),
        'c2_w': 0.1 * jax.random.normal(ks[8], (out_ch, mid_ch, 3, 3), jnp.float32),
        'c2_b': 0.1 * jax.random.normal(ks[9], (out_ch,), jnp.float32),
        'bn2_g': 1.0 + 0.1 * jax.random.normal(ks[10], (out_ch,), jnp.float32),
        'bn2_b': 0.1 * jax.random.normal(ks[11], (out_ch,), jnp.float32),
        'bn2_m': 0.1 * jax.random.normal(ks[12], (out_ch,), jnp.float32),
        'bn2_v': 1.0 + 0.1 * jnp.abs(jax.random.normal(ks[13], (out_ch,), jnp.float32)),
    }

    x1 = jax.random.normal(ks[14], (N, in_ch, H1, W1), jnp.float32)
    x2 = jax.random.normal(ks[15], (N, in_ch - out_ch, H2, W2), jnp.float32)

    out = up_forward(x1, x2, params)
    jax.block_until_ready(out)

    ref = up_forward_ref(x1, x2, params)
    assert out.shape == (N, out_ch, H2, W2), out.shape
    np.testing.assert_allclose(np.asarray(out), np.asarray(ref),
                               rtol=1e-4, atol=1e-4)
    print("KERNEL_OK")
</pallas_src>

<mosaic_0001>
module attributes {stable_mosaic.version = 11 : i64} {
  func.func @kernel(%arg0: i32, %arg1: memref<1x8x128xf32, #tpu.memory_space<vmem>>, %arg2: memref<1x4x648xf32, #tpu.memory_space<vmem>>, %arg3: memref<16x8xf32, #tpu.memory_space<vmem>>, %arg4: memref<16x1xf32, #tpu.memory_space<vmem>>, %arg5: memref<256x324xf32, #tpu.memory_space<vmem>>, %arg6: memref<4x72xf32, #tpu.memory_space<vmem>>, %arg7: memref<4x1xf32, #tpu.memory_space<vmem>>, %arg8: memref<4x1xf32, #tpu.memory_space<vmem>>, %arg9: memref<4x36xf32, #tpu.memory_space<vmem>>, %arg10: memref<4x1xf32, #tpu.memory_space<vmem>>, %arg11: memref<4x1xf32, #tpu.memory_space<vmem>>, %arg12: memref<1x648xf32, #tpu.memory_space<vmem>>, %arg13: memref<1x4x648xf32, #tpu.memory_space<vmem>>, %arg14: memref<8x256xf32, #tpu.memory_space<vmem>>, %arg15: memref<8x904xf32, #tpu.memory_space<vmem>>, %arg16: memref<72x648xf32, #tpu.memory_space<vmem>>, %arg17: memref<4x904xf32, #tpu.memory_space<vmem>>, %arg18: memref<36x648xf32, #tpu.memory_space<vmem>>) attributes {dimension_semantics = [#tpu.dimension_semantics<parallel>], iteration_bounds = array<i64: 1>, scalar_prefetch = 0 : i64, scratch_operands = 5 : i64, tpu.core_type = #tpu.core_type<tc>, window_params = [{transform_indices = @transform_0, window_bounds = array<i64: 1, 8, 128>}, {transform_indices = @transform_1, window_bounds = array<i64: 1, 4, 648>}, {pipeline_mode = #tpu.pipeline_mode<synchronous>, transform_indices = @transform_2, window_bounds = array<i64: 16, 8>}, {pipeline_mode = #tpu.pipeline_mode<synchronous>, transform_indices = @transform_3, window_bounds = array<i64: 16, 1>}, {pipeline_mode = #tpu.pipeline_mode<synchronous>, transform_indices = @transform_4, window_bounds = array<i64: 256, 324>}, {pipeline_mode = #tpu.pipeline_mode<synchronous>, transform_indices = @transform_5, window_bounds = array<i64: 4, 72>}, {pipeline_mode = #tpu.pipeline_mode<synchronous>, transform_indices = @transform_6, window_bounds = array<i64: 4, 1>}, {pipeline_mode = #tpu.pipeline_mode<synchronous>, transform_indices = @transform_7, window_bounds = array<i64: 4, 1>}, {pipeline_mode = #tpu.pipeline_mode<synchronous>, transform_indices = @transform_8, window_bounds = array<i64: 4, 36>}, {pipeline_mode = #tpu.pipeline_mode<synchronous>, transform_indices = @transform_9, window_bounds = array<i64: 4, 1>}, {pipeline_mode = #tpu.pipeline_mode<synchronous>, transform_indices = @transform_10, window_bounds = array<i64: 4, 1>}, {pipeline_mode = #tpu.pipeline_mode<synchronous>, transform_indices = @transform_11, window_bounds = array<i64: 1, 648>}, {transform_indices = @transform_12, window_bounds = array<i64: 1, 4, 648>}]} {
    %cst = arith.constant 0.000000e+00 : f32
    %0 = vector.broadcast %cst : f32 to vector<8x128xf32>
    %c0 = arith.constant 0 : index
    %c0_0 = arith.constant 0 : index
    %1 = vector.load %arg15[%c0, %c0_0] : memref<8x904xf32, #tpu.memory_space<vmem>>, vector<8x128xf32>
    tpu.vector_store %arg15[%c0, %c0_0], %0 {strides = array<i32>} : memref<8x904xf32, #tpu.memory_space<vmem>>, vector<8x128xf32>,
    %cst_1 = arith.constant 0.000000e+00 : f32
    %2 = vector.broadcast %cst_1 : f32 to vector<8x128xf32>
    %c0_2 = arith.constant 0 : index
    %c776 = arith.constant 776 : index
    %3 = vector.load %arg15[%c0_2, %c776] : memref<8x904xf32, #tpu.memory_space<vmem>>, vector<8x128xf32>
    tpu.vector_store %arg15[%c0_2, %c776], %2 {strides = array<i32>} : memref<8x904xf32, #tpu.memory_space<vmem>>, vector<8x128xf32>,
    %cst_3 = arith.constant 0.000000e+00 : f32
    %4 = vector.broadcast %cst_3 : f32 to vector<4x128xf32>
    %c0_4 = arith.constant 0 : index
    %c0_5 = arith.constant 0 : index
    %5 = vector.load %arg17[%c0_4, %c0_5] : memref<4x904xf32, #tpu.memory_space<vmem>>, vector<4x128xf32>
    tpu.vector_store %arg17[%c0_4, %c0_5], %4 {strides = array<i32>} : memref<4x904xf32, #tpu.memory_space<vmem>>, vector<4x128xf32>,
    %cst_6 = arith.constant 0.000000e+00 : f32
    %6 = vector.broadcast %cst_6 : f32 to vector<4x128xf32>
    %c0_7 = arith.constant 0 : index
    %c776_8 = arith.constant 776 : index
    %7 = vector.load %arg17[%c0_7, %c776_8] : memref<4x904xf32, #tpu.memory_space<vmem>>, vector<4x128xf32>
    tpu.vector_store %arg17[%c0_7, %c776_8], %6 {strides = array<i32>} : memref<4x904xf32, #tpu.memory_space<vmem>>, vector<4x128xf32>,
    %c0_9 = arith.constant 0 : index
    %c0_10 = arith.constant 0 : index
    %8 = vector.load %arg3[%c0_9, %c0_10] : memref<16x8xf32, #tpu.memory_space<vmem>>, vector<16x8xf32>
    %c0_11 = arith.constant 0 : index
    %c0_12 = arith.constant 0 : index
    %c0_13 = arith.constant 0 : index
    %9 = vector.load %arg1[%c0_11, %c0_12, %c0_13] : memref<1x8x128xf32, #tpu.memory_space<vmem>>, vector<1x8x128xf32>
    %10 = vector.shape_cast %9 : vector<1x8x128xf32> to vector<8x128xf32>
    %cst_14 = arith.constant dense<0.000000e+00> : vector<16x128xf32>
    %11 = tpu.matmul %8, %10, %cst_14 {dimension_numbers = #tpu.dot_dimension_numbers<[1], [0], [0], [1], [0, 0, 1, 1], [], []>} : vector<16x8xf32>, vector<8x128xf32>, vector<16x128xf32> -> vector<16x128xf32>
    %c0_15 = arith.constant 0 : index
    %c0_16 = arith.constant 0 : index
    %12 = vector.load %arg4[%c0_15, %c0_16] : memref<16x1xf32, #tpu.memory_space<vmem>>, vector<16x1xf32>
    %13 = vector.broadcast %12 : vector<16x1xf32> to vector<16x128xf32>
    %14 = arith.addf %11, %13 : vector<16x128xf32>
    %15 = vector.extract_strided_slice %14 {offsets = [0, 0], sizes = [4, 64], strides = [1, 1]} : vector<16x128xf32> to vector<4x64xf32>
    %c0_17 = arith.constant 0 : index
    %c0_18 = arith.constant 0 : index
    %16 = vector.load %arg14[%c0_17, %c0_18] : memref<8x256xf32, #tpu.memory_space<vmem>>, vector<4x64xf32>
    tpu.vector_store %arg14[%c0_17, %c0_18], %15 {strides = array<i32>} : memref<8x256xf32, #tpu.memory_space<vmem>>, vector<4x64xf32>,
    %17 = vector.extract_strided_slice %14 {offsets = [4, 0], sizes = [4, 64], strides = [1, 1]} : vector<16x128xf32> to vector<4x64xf32>
    %c0_19 = arith.constant 0 : index
    %c64 = arith.constant 64 : index
    %18 = vector.load %arg14[%c0_19, %c64] : memref<8x256xf32, #tpu.memory_space<vmem>>, vector<4x64xf32>
    tpu.vector_store %arg14[%c0_19, %c64], %17 {strides = array<i32>} : memref<8x256xf32, #tpu.memory_space<vmem>>, vector<4x64xf32>,
    %19 = vector.extract_strided_slice %14 {offsets = [8, 0], sizes = [4, 64], strides = [1, 1]} : vector<16x128xf32> to vector<4x64xf32>
    %c0_20 = arith.constant 0 : index
    %c128 = arith.constant 128 : index
    %20 = vector.load %arg14[%c0_20, %c128] : memref<8x256xf32, #tpu.memory_space<vmem>>, vector<4x64xf32>
    tpu.vector_store %arg14[%c0_20, %c128], %19 {strides = array<i32>} : memref<8x256xf32, #tpu.memory_space<vmem>>, vector<4x64xf32>,
    %21 = vector.extract_strided_slice %14 {offsets = [12, 0], sizes = [4, 64], strides = [1, 1]} : vector<16x128xf32> to vector<4x64xf32>
    %c0_21 = arith.constant 0 : index
    %c192 = arith.constant 192 : index
    %22 = vector.load %arg14[%c0_21, %c192] : memref<8x256xf32, #tpu.memory_space<vmem>>, vector<4x64xf32>
    tpu.vector_store %arg14[%c0_21, %c192], %21 {strides = array<i32>} : memref<8x256xf32, #tpu.memory_space<vmem>>, vector<4x64xf32>,
    %23 = vector.extract_strided_slice %14 {offsets = [0, 64], sizes = [4, 64], strides = [1, 1]} : vector<16x128xf32> to vector<4x64xf32>
    %c4 = arith.constant 4 : index
    %c0_22 = arith.constant 0 : index
    %24 = vector.load %arg14[%c4, %c0_22] : memref<8x256xf32, #tpu.memory_space<vmem>>, vector<4x64xf32>
    tpu.vector_store %arg14[%c4, %c0_22], %23 {strides = array<i32>} : memref<8x256xf32, #tpu.memory_space<vmem>>, vector<4x64xf32>,
    %25 = vector.extract_strided_slice %14 {offsets = [4, 64], sizes = [4, 64], strides = [1, 1]} : vector<16x128xf32> to vector<4x64xf32>
    %c4_23 = arith.constant 4 : index
    %c64_24 = arith.constant 64 : index
    %26 = vector.load %arg14[%c4_23, %c64_24] : memref<8x256xf32, #tpu.memory_space<vmem>>, vector<4x64xf32>
    tpu.vector_store %arg14[%c4_23, %c64_24], %25 {strides = array<i32>} : memref<8x256xf32, #tpu.memory_space<vmem>>, vector<4x64xf32>,
    %27 = vector.extract_strided_slice %14 {offsets = [8, 64], sizes = [4, 64], strides = [1, 1]} : vector<16x128xf32> to vector<4x64xf32>
    %c4_25 = arith.constant 4 : index
    %c128_26 = arith.constant 128 : index
    %28 = vector.load %arg14[%c4_25, %c128_26] : memref<8x256xf32, #tpu.memory_space<vmem>>, vector<4x64xf32>
    tpu.vector_store %arg14[%c4_25, %c128_26], %27 {strides = array<i32>} : memref<8x256xf32, #tpu.memory_space<vmem>>, vector<4x64xf32>,
    %29 = vector.extract_strided_slice %14 {offsets = [12, 64], sizes = [4, 64], strides = [1, 1]} : vector<16x128xf32> to vector<4x64xf32>
    %c4_27 = arith.constant 4 : index
    %c192_28 = arith.constant 192 : index
    %30 = vector.load %arg14[%c4_27, %c192_28] : memref<8x256xf32, #tpu.memory_space<vmem>>, vector<4x64xf32>
    tpu.vector_store %arg14[%c4_27, %c192_28], %29 {strides = array<i32>} : memref<8x256xf32, #tpu.memory_space<vmem>>, vector<4x64xf32>,
    %c0_29 = arith.constant 0 : index
    %c0_30 = arith.constant 0 : index
    %31 = vector.load %arg14[%c0_29, %c0_30] : memref<8x256xf32, #tpu.memory_space<vmem>>, vector<8x256xf32>
    %c0_31 = arith.constant 0 : index
    %c0_32 = arith.constant 0 : index
    %32 = vector.load %arg5[%c0_31, %c0_32] : memref<256x324xf32, #tpu.memory_space<vmem>>, vector<256x324xf32>
    %cst_33 = arith.constant dense<0.000000e+00> : vector<8x324xf32>
    %33 = tpu.matmul %31, %32, %cst_33 {dimension_numbers = #tpu.dot_dimension_numbers<[1], [0], [0], [1], [0, 0, 1, 1], [], []>} : vector<8x256xf32>, vector<256x324xf32>, vector<8x324xf32> -> vector<8x324xf32>
    %c0_34 = arith.constant 0 : index
    %c0_35 = arith.constant 0 : index
    %c0_36 = arith.constant 0 : index
    %34 = vector.load %arg2[%c0_34, %c0_35, %c0_36] : memref<1x4x648xf32, #tpu.memory_space<vmem>>, vector<1x4x648xf32>
    %35 = vector.shape_cast %34 : vector<1x4x648xf32> to vector<4x648xf32>
    %c0_37 = arith.constant 0 : index
    %c128_38 = arith.constant 128 : index
    %36 = vector.load %arg15[%c0_37, %c128_38] : memref<8x904xf32, #tpu.memory_space<vmem>>, vector<4x648xf32>
    tpu.vector_store %arg15[%c0_37, %c128_38], %35 {strides = array<i32>} : memref<8x904xf32, #tpu.memory_space<vmem>>, vector<4x648xf32>,
    %37 = vector.extract_strided_slice %33 {offsets = [0, 0], sizes = [4, 324], strides = [1, 1]} : vector<8x324xf32> to vector<4x324xf32>
    %c4_39 = arith.constant 4 : index
    %c128_40 = arith.constant 128 : index
    %38 = vector.load %arg15[%c4_39, %c128_40] : memref<8x904xf32, #tpu.memory_space<vmem>>, vector<4x324xf32>
    tpu.vector_store %arg15[%c4_39, %c128_40], %37 {strides = array<i32>} : memref<8x904xf32, #tpu.memory_space<vmem>>, vector<4x324xf32>,
    %39 = vector.extract_strided_slice %33 {offsets = [4, 0], sizes = [4, 324], strides = [1, 1]} : vector<8x324xf32> to vector<4x324xf32>
    %c4_41 = arith.constant 4 : index
    %c452 = arith.constant 452 : index
    %40 = vector.load %arg15[%c4_41, %c452] : memref<8x904xf32, #tpu.memory_space<vmem>>, vector<4x324xf32>
    tpu.vector_store %arg15[%c4_41, %c452], %39 {strides = array<i32>} : memref<8x904xf32, #tpu.memory_space<vmem>>, vector<4x324xf32>,
    %c0_42 = arith.constant 0 : index
    %c109 = arith.constant 109 : index
    %41 = vector.load %arg15[%c0_42, %c109] : memref<8x904xf32, #tpu.memory_space<vmem>>, vector<8x648xf32>
    %c0_43 = arith.constant 0 : index
    %c0_44 = arith.constant 0 : index
    %42 = vector.load %arg16[%c0_43, %c0_44] : memref<72x648xf32, #tpu.memory_space<vmem>>, vector<8x648xf32>
    tpu.vector_store %arg16[%c0_43, %c0_44], %41 {strides = array<i32>} : memref<72x648xf32, #tpu.memory_space<vmem>>, vector<8x648xf32>,
    %c0_45 = arith.constant 0 : index
    %c110 = arith.constant 110 : index
    %43 = vector.load %arg15[%c0_45, %c110] : memref<8x904xf32, #tpu.memory_space<vmem>>, vector<8x648xf32>
    %c8 = arith.constant 8 : index
    %c0_46 = arith.constant 0 : index
    %44 = vector.load %arg16[%c8, %c0_46] : memref<72x648xf32, #tpu.memory_space<vmem>>, vector<8x648xf32>
    tpu.vector_store %arg16[%c8, %c0_46], %43 {strides = array<i32>} : memref<72x648xf32, #tpu.memory_space<vmem>>, vector<8x648xf32>,
    %c0_47 = arith.constant 0 : index
    %c111 = arith.constant 111 : index
    %45 = vector.load %arg15[%c0_47, %c111] : memref<8x904xf32, #tpu.memory_space<vmem>>, vector<8x648xf32>
    %c16 = arith.constant 16 : index
    %c0_48 = arith.constant 0 : index
    %46 = vector.load %arg16[%c16, %c0_48] : memref<72x648xf32, #tpu.memory_space<vmem>>, vector<8x648xf32>
    tpu.vector_store %arg16[%c16, %c0_48], %45 {strides = array<i32>} : memref<72x648xf32, #tpu.memory_space<vmem>>, vector<8x648xf32>,
    %c0_49 = arith.constant 0 : index
    %c127 = arith.constant 127 : index
    %47 = vector.load %arg15[%c0_49, %c127] : memref<8x904xf32, #tpu.memory_space<vmem>>, vector<8x648xf32>
    %c24 = arith.constant 24 : index
    %c0_50 = arith.constant 0 : index
    %48 = vector.load %arg16[%c24, %c0_50] : memref<72x648xf32, #tpu.memory_space<vmem>>, vector<8x648xf32>
    tpu.vector_store %arg16[%c24, %c0_50], %47 {strides = array<i32>} : memref<72x648xf32, #tpu.memory_space<vmem>>, vector<8x648xf32>,
    %c0_51 = arith.constant 0 : index
    %c128_52 = arith.constant 128 : index
    %49 = vector.load %arg15[%c0_51, %c128_52] : memref<8x904xf32, #tpu.memory_space<vmem>>, vector<8x648xf32>
    %c32 = arith.constant 32 : index
    %c0_53 = arith.constant 0 : index
    %50 = vector.load %arg16[%c32, %c0_53] : memref<72x648xf32, #tpu.memory_space<vmem>>, vector<8x648xf32>
    tpu.vector_store %arg16[%c32, %c0_53], %49 {strides = array<i32>} : memref<72x648xf32, #tpu.memory_space<vmem>>, vector<8x648xf32>,
    %c0_54 = arith.constant 0 : index
    %c129 = arith.constant 129 : index
    %51 = vector.load %arg15[%c0_54, %c129] : memref<8x904xf32, #tpu.memory_space<vmem>>, vector<8x648xf32>
    %c40 = arith.constant 40 : index
    %c0_55 = arith.constant 0 : index
    %52 = vector.load %arg16[%c40, %c0_55] : memref<72x648xf32, #tpu.memory_space<vmem>>, vector<8x648xf32>
    tpu.vector_store %arg16[%c40, %c0_55], %51 {strides = array<i32>} : memref<72x648xf32, #tpu.memory_space<vmem>>, vector<8x648xf32>,
    %c0_56 = arith.constant 0 : index
    %c145 = arith.constant 145 : index
    %53 = vector.load %arg15[%c0_56, %c145] : memref<8x904xf32, #tpu.memory_space<vmem>>, vector<8x648xf32>
    %c48 = arith.constant 48 : index
    %c0_57 = arith.constant 0 : index
    %54 = vector.load %arg16[%c48, %c0_57] : memref<72x648xf32, #tpu.memory_space<vmem>>, vector<8x648xf32>
    tpu.vector_store %arg16[%c48, %c0_57], %53 {strides = array<i32>} : memref<72x648xf32, #tpu.memory_space<vmem>>, vector<8x648xf32>,
    %c0_58 = arith.constant 0 : index
    %c146 = arith.constant 146 : index
    %55 = vector.load %arg15[%c0_58, %c146] : memref<8x904xf32, #tpu.memory_space<vmem>>, vector<8x648xf32>
    %c56 = arith.constant 56 : index
    %c0_59 = arith.constant 0 : index
    %56 = vector.load %arg16[%c56, %c0_59] : memref<72x648xf32, #tpu.memory_space<vmem>>, vector<8x648xf32>
    tpu.vector_store %arg16[%c56, %c0_59], %55 {strides = array<i32>} : memref<72x648xf32, #tpu.memory_space<vmem>>, vector<8x648xf32>,
    %c0_60 = arith.constant 0 : index
    %c147 = arith.constant 147 : index
    %57 = vector.load %arg15[%c0_60, %c147] : memref<8x904xf32, #tpu.memory_space<vmem>>, vector<8x648xf32>
    %c64_61 = arith.constant 64 : index
    %c0_62 = arith.constant 0 : index
    %58 = vector.load %arg16[%c64_61, %c0_62] : memref<72x648xf32, #tpu.memory_space<vmem>>, vector<8x648xf32>
    tpu.vector_store %arg16[%c64_61, %c0_62], %57 {strides = array<i32>} : memref<72x648xf32, #tpu.memory_space<vmem>>, vector<8x648xf32>,
    %c0_63 = arith.constant 0 : index
    %c0_64 = arith.constant 0 : index
    %59 = vector.load %arg6[%c0_63, %c0_64] : memref<4x72xf32, #tpu.memory_space<vmem>>, vector<4x72xf32>
    %c0_65 = arith.constant 0 : index
    %c0_66 = arith.constant 0 : index
    %60 = vector.load %arg16[%c0_65, %c0_66] : memref<72x648xf32, #tpu.memory_space<vmem>>, vector<72x648xf32>
    %cst_67 = arith.constant dense<0.000000e+00> : vector<4x648xf32>
    %61 = tpu.matmul %59, %60, %cst_67 {dimension_numbers = #tpu.dot_dimension_numbers<[1], [0], [0], [1], [0, 0, 1, 1], [], []>} : vector<4x72xf32>, vector<72x648xf32>, vector<4x648xf32> -> vector<4x648xf32>
    %c0_68 = arith.constant 0 : index
    %c0_69 = arith.constant 0 : index
    %62 = vector.load %arg7[%c0_68, %c0_69] : memref<4x1xf32, #tpu.memory_space<vmem>>, vector<4x1xf32>
    %63 = vector.broadcast %62 : vector<4x1xf32> to vector<4x648xf32>
    %64 = arith.mulf %61, %63 : vector<4x648xf32>
    %c0_70 = arith.constant 0 : index
    %c0_71 = arith.constant 0 : index
    %65 = vector.load %arg8[%c0_70, %c0_71] : memref<4x1xf32, #tpu.memory_space<vmem>>, vector<4x1xf32>
    %66 = vector.broadcast %65 : vector<4x1xf32> to vector<4x648xf32>
    %67 = arith.addf %64, %66 : vector<4x648xf32>
    %cst_72 = arith.constant 0.000000e+00 : f32
    %68 = vector.broadcast %cst_72 : f32 to vector<4x648xf32>
    %69 = arith.maximumf %67, %68 : vector<4x648xf32>
    %c0_73 = arith.constant 0 : index
    %c0_74 = arith.constant 0 : index
    %70 = vector.load %arg12[%c0_73, %c0_74] : memref<1x648xf32, #tpu.memory_space<vmem>>, vector<1x648xf32>
    %71 = vector.broadcast %70 : vector<1x648xf32> to vector<4x648xf32>
    %72 = arith.mulf %69, %71 : vector<4x648xf32>
    %c0_75 = arith.constant 0 : index
    %c128_76 = arith.constant 128 : index
    %73 = vector.load %arg17[%c0_75, %c128_76] : memref<4x904xf32, #tpu.memory_space<vmem>>, vector<4x648xf32>
    tpu.vector_store %arg17[%c0_75, %c128_76], %72 {strides = array<i32>} : memref<4x904xf32, #tpu.memory_space<vmem>>, vector<4x648xf32>,
    %c0_77 = arith.constant 0 : index
    %c109_78 = arith.constant 109 : index
    %74 = vector.load %arg17[%c0_77, %c109_78] : memref<4x904xf32, #tpu.memory_space<vmem>>, vector<4x648xf32>
    %c0_79 = arith.constant 0 : index
    %c0_80 = arith.constant 0 : index
    %75 = vector.load %arg18[%c0_79, %c0_80] : memref<36x648xf32, #tpu.memory_space<vmem>>, vector<4x648xf32>
    tpu.vector_store %arg18[%c0_79, %c0_80], %74 {strides = array<i32>} : memref<36x648xf32, #tpu.memory_space<vmem>>, vector<4x648xf32>,
    %c0_81 = arith.constant 0 : index
    %c110_82 = arith.constant 110 : index
    %76 = vector.load %arg17[%c0_81, %c110_82] : memref<4x904xf32, #tpu.memory_space<vmem>>, vector<4x648xf32>
    %c4_83 = arith.constant 4 : index
    %c0_84 = arith.constant 0 : index
    %77 = vector.load %arg18[%c4_83, %c0_84] : memref<36x648xf32, #tpu.memory_space<vmem>>, vector<4x648xf32>
    tpu.vector_store %arg18[%c4_83, %c0_84], %76 {strides = array<i32>} : memref<36x648xf32, #tpu.memory_space<vmem>>, vector<4x648xf32>,
    %c0_85 = arith.constant 0 : index
    %c111_86 = arith.constant 111 : index
    %78 = vector.load %arg17[%c0_85, %c111_86] : memref<4x904xf32, #tpu.memory_space<vmem>>, vector<4x648xf32>
    %c8_87 = arith.constant 8 : index
    %c0_88 = arith.constant 0 : index
    %79 = vector.load %arg18[%c8_87, %c0_88] : memref<36x648xf32, #tpu.memory_space<vmem>>, vector<4x648xf32>
    tpu.vector_store %arg18[%c8_87, %c0_88], %78 {strides = array<i32>} : memref<36x648xf32, #tpu.memory_space<vmem>>, vector<4x648xf32>,
    %c0_89 = arith.constant 0 : index
    %c127_90 = arith.constant 127 : index
    %80 = vector.load %arg17[%c0_89, %c127_90] : memref<4x904xf32, #tpu.memory_space<vmem>>, vector<4x648xf32>
    %c12 = arith.constant 12 : index
    %c0_91 = arith.constant 0 : index
    %81 = vector.load %arg18[%c12, %c0_91] : memref<36x648xf32, #tpu.memory_space<vmem>>, vector<4x648xf32>
    tpu.vector_store %arg18[%c12, %c0_91], %80 {strides = array<i32>} : memref<36x648xf32, #tpu.memory_space<vmem>>, vector<4x648xf32>,
    %c0_92 = arith.constant 0 : index
    %c128_93 = arith.constant 128 : index
    %82 = vector.load %arg17[%c0_92, %c128_93] : memref<4x904xf32, #tpu.memory_space<vmem>>, vector<4x648xf32>
    %c16_94 = arith.constant 16 : index
    %c0_95 = arith.constant 0 : index
    %83 = vector.load %arg18[%c16_94, %c0_95] : memref<36x648xf32, #tpu.memory_space<vmem>>, vector<4x648xf32>
    tpu.vector_store %arg18[%c16_94, %c0_95], %82 {strides = array<i32>} : memref<36x648xf32, #tpu.memory_space<vmem>>, vector<4x648xf32>,
    %c0_96 = arith.constant 0 : index
    %c129_97 = arith.constant 129 : index
    %84 = vector.load %arg17[%c0_96, %c129_97] : memref<4x904xf32, #tpu.memory_space<vmem>>, vector<4x648xf32>
    %c20 = arith.constant 20 : index
    %c0_98 = arith.constant 0 : index
    %85 = vector.load %arg18[%c20, %c0_98] : memref<36x648xf32, #tpu.memory_space<vmem>>, vector<4x648xf32>
    tpu.vector_store %arg18[%c20, %c0_98], %84 {strides = array<i32>} : memref<36x648xf32, #tpu.memory_space<vmem>>, vector<4x648xf32>,
    %c0_99 = arith.constant 0 : index
    %c145_100 = arith.constant 145 : index
    %86 = vector.load %arg17[%c0_99, %c145_100] : memref<4x904xf32, #tpu.memory_space<vmem>>, vector<4x648xf32>
    %c24_101 = arith.constant 24 : index
    %c0_102 = arith.constant 0 : index
    %87 = vector.load %arg18[%c24_101, %c0_102] : memref<36x648xf32, #tpu.memory_space<vmem>>, vector<4x648xf32>
    tpu.vector_store %arg18[%c24_101, %c0_102], %86 {strides = array<i32>} : memref<36x648xf32, #tpu.memory_space<vmem>>, vector<4x648xf32>,
    %c0_103 = arith.constant 0 : index
    %c146_104 = arith.constant 146 : index
    %88 = vector.load %arg17[%c0_103, %c146_104] : memref<4x904xf32, #tpu.memory_space<vmem>>, vector<4x648xf32>
    %c28 = arith.constant 28 : index
    %c0_105 = arith.constant 0 : index
    %89 = vector.load %arg18[%c28, %c0_105] : memref<36x648xf32, #tpu.memory_space<vmem>>, vector<4x648xf32>
    tpu.vector_store %arg18[%c28, %c0_105], %88 {strides = array<i32>} : memref<36x648xf32, #tpu.memory_space<vmem>>, vector<4x648xf32>,
    %c0_106 = arith.constant 0 : index
    %c147_107 = arith.constant 147 : index
    %90 = vector.load %arg17[%c0_106, %c147_107] : memref<4x904xf32, #tpu.memory_space<vmem>>, vector<4x648xf32>
    %c32_108 = arith.constant 32 : index
    %c0_109 = arith.constant 0 : index
    %91 = vector.load %arg18[%c32_108, %c0_109] : memref<36x648xf32, #tpu.memory_space<vmem>>, vector<4x648xf32>
    tpu.vector_store %arg18[%c32_108, %c0_109], %90 {strides = array<i32>} : memref<36x648xf32, #tpu.memory_space<vmem>>, vector<4x648xf32>,
    %c0_110 = arith.constant 0 : index
    %c0_111 = arith.constant 0 : index
    %92 = vector.load %arg9[%c0_110, %c0_111] : memref<4x36xf32, #tpu.memory_space<vmem>>, vector<4x36xf32>
    %c0_112 = arith.constant 0 : index
    %c0_113 = arith.constant 0 : index
    %93 = vector.load %arg18[%c0_112, %c0_113] : memref<36x648xf32, #tpu.memory_space<vmem>>, vector<36x648xf32>
    %cst_114 = arith.constant dense<0.000000e+00> : vector<4x648xf32>
    %94 = tpu.matmul %92, %93, %cst_114 {dimension_numbers = #tpu.dot_dimension_numbers<[1], [0], [0], [1], [0, 0, 1, 1], [], []>} : vector<4x36xf32>, vector<36x648xf32>, vector<4x648xf32> -> vector<4x648xf32>
    %c0_115 = arith.constant 0 : index
    %c0_116 = arith.constant 0 : index
    %95 = vector.load %arg10[%c0_115, %c0_116] : memref<4x1xf32, #tpu.memory_space<vmem>>, vector<4x1xf32>
    %96 = vector.broadcast %95 : vector<4x1xf32> to vector<4x648xf32>
    %97 = arith.mulf %94, %96 : vector<4x648xf32>
    %c0_117 = arith.constant 0 : index
    %c0_118 = arith.constant 0 : index
    %98 = vector.load %arg11[%c0_117, %c0_118] : memref<4x1xf32, #tpu.memory_space<vmem>>, vector<4x1xf32>
    %99 = vector.broadcast %98 : vector<4x1xf32> to vector<4x648xf32>
    %100 = arith.addf %97, %99 : vector<4x648xf32>
    %cst_119 = arith.constant 0.000000e+00 : f32
    %101 = vector.broadcast %cst_119 : f32 to vector<4x648xf32>
    %102 = arith.maximumf %100, %101 : vector<4x648xf32>
    %c0_120 = arith.constant 0 : index
    %c0_121 = arith.constant 0 : index
    %c0_122 = arith.constant 0 : index
    %103 = vector.load %arg13[%c0_120, %c0_121, %c0_122] : memref<1x4x648xf32, #tpu.memory_space<vmem>>, vector<1x4x648xf32>
    %104 = vector.shape_cast %103 : vector<1x4x648xf32> to vector<4x648xf32>
    %105 = vector.shape_cast %102 : vector<4x648xf32> to vector<1x4x648xf32>
    tpu.vector_store %arg13[%c0_120, %c0_121, %c0_122], %105 {strides = array<i32>} : memref<1x4x648xf32, #tpu.memory_space<vmem>>, vector<1x4x648xf32>,
    return
  }
  func.func @transform_0(%arg0: i32) -> (i32, i32, i32) {
    %c0_i32 = arith.constant 0 : i32
    %c0_i32_0 = arith.constant 0 : i32
    %c0_i32_1 = arith.constant 0 : i32
    return %arg0, %c0_i32, %c0_i32_0 : i32, i32, i32
  }
  func.func @transform_1(%arg0: i32) -> (i32, i32, i32) {
    %c0_i32 = arith.constant 0 : i32
    %c0_i32_0 = arith.constant 0 : i32
    %c0_i32_1 = arith.constant 0 : i32
    return %arg0, %c0_i32, %c0_i32_0 : i32, i32, i32
  }
  func.func @transform_2(%arg0: i32) -> (i32, i32) {
    %c0_i32 = arith.constant 0 : i32
    %c0_i32_0 = arith.constant 0 : i32
    %c0_i32_1 = arith.constant 0 : i32
    return %c0_i32, %c0_i32_0 : i32, i32
  }
  func.func @transform_3(%arg0: i32) -> (i32, i32) {
    %c0_i32 = arith.constant 0 : i32
    %c0_i32_0 = arith.constant 0 : i32
    %c0_i32_1 = arith.constant 0 : i32
    return %c0_i32, %c0_i32_0 : i32, i32
  }
  func.func @transform_4(%arg0: i32) -> (i32, i32) {
    %c0_i32 = arith.constant 0 : i32
    %c0_i32_0 = arith.constant 0 : i32
    %c0_i32_1 = arith.constant 0 : i32
    return %c0_i32, %c0_i32_0 : i32, i32
  }
  func.func @transform_5(%arg0: i32) -> (i32, i32) {
    %c0_i32 = arith.constant 0 : i32
    %c0_i32_0 = arith.constant 0 : i32
    %c0_i32_1 = arith.constant 0 : i32
    return %c0_i32, %c0_i32_0 : i32, i32
  }
  func.func @transform_6(%arg0: i32) -> (i32, i32) {
    %c0_i32 = arith.constant 0 : i32
    %c0_i32_0 = arith.constant 0 : i32
    %c0_i32_1 = arith.constant 0 : i32
    return %c0_i32, %c0_i32_0 : i32, i32
  }
  func.func @transform_7(%arg0: i32) -> (i32, i32) {
    %c0_i32 = arith.constant 0 : i32
    %c0_i32_0 = arith.constant 0 : i32
    %c0_i32_1 = arith.constant 0 : i32
    return %c0_i32, %c0_i32_0 : i32, i32
  }
  func.func @transform_8(%arg0: i32) -> (i32, i32) {
    %c0_i32 = arith.constant 0 : i32
    %c0_i32_0 = arith.constant 0 : i32
    %c0_i32_1 = arith.constant 0 : i32
    return %c0_i32, %c0_i32_0 : i32, i32
  }
  func.func @transform_9(%arg0: i32) -> (i32, i32) {
    %c0_i32 = arith.constant 0 : i32
    %c0_i32_0 = arith.constant 0 : i32
    %c0_i32_1 = arith.constant 0 : i32
    return %c0_i32, %c0_i32_0 : i32, i32
  }
  func.func @transform_10(%arg0: i32) -> (i32, i32) {
    %c0_i32 = arith.constant 0 : i32
    %c0_i32_0 = arith.constant 0 : i32
    %c0_i32_1 = arith.constant 0 : i32
    return %c0_i32, %c0_i32_0 : i32, i32
  }
  func.func @transform_11(%arg0: i32) -> (i32, i32) {
    %c0_i32 = arith.constant 0 : i32
    %c0_i32_0 = arith.constant 0 : i32
    %c0_i32_1 = arith.constant 0 : i32
    return %c0_i32, %c0_i32_0 : i32, i32
  }
  func.func @transform_12(%arg0: i32) -> (i32, i32, i32) {
    %c0_i32 = arith.constant 0 : i32
    %c0_i32_0 = arith.constant 0 : i32
    %c0_i32_1 = arith.constant 0 : i32
    return %arg0, %c0_i32, %c0_i32_0 : i32, i32, i32
  }
}

</mosaic_0001>

<llo_original>
// kernel: tpu_custom_call.1
$region0: #{tpu_custom_call.1}
  #allocation0 [shape = 'u32[]', space=smem, size = 0x4, offset = 0x4, fixed_abs, tag = 'smem constant byte address 0x4 - core index']
  #allocation1 [shape = 'u32[144,128]{1,0:T(1,128)}', space=vmem, size = 0x12000, scoped, tag = 'internal scratch']
  #allocation2 [shape = 'f32[8,256]{1,0:T(8,128)}', space=vmem, size = 0x2000, scoped, tag = 'scratch operand']
  #allocation3 [shape = 'f32[8,904]{1,0:T(8,128)}', space=vmem, size = 0x8000, scoped, tag = 'scratch operand']
  #allocation4 [shape = 'f32[72,648]{1,0:T(8,128)}', space=vmem, size = 0x36000, scoped, tag = 'scratch operand']
  #allocation5 [shape = 'f32[4,904]{1,0:T(4,128)}', space=vmem, size = 0x4000, scoped, tag = 'scratch operand']
  #allocation6 [shape = 'f32[36,648]{1,0:T(8,128)}', space=vmem, size = 0x1e000, scoped, tag = 'scratch operand']
  %s0 = inlined_call_operand.vmem [shape: f32[1,8,128], index: 0, kind: input, shape index: {}]
  %s1 = inlined_call_operand.vmem [shape: f32[1,4,648], index: 1, kind: input, shape index: {}]
  %s2 = inlined_call_operand.vmem [shape: f32[16,8], index: 2, kind: input, shape index: {}]
  %s3 = inlined_call_operand.vmem [shape: f32[16,1], index: 3, kind: input, shape index: {}]
  %s4 = inlined_call_operand.vmem [shape: f32[256,324], index: 4, kind: input, shape index: {}]
  %s5 = inlined_call_operand.vmem [shape: f32[4,72], index: 5, kind: input, shape index: {}]
  %s6 = inlined_call_operand.vmem [shape: f32[4,1], index: 6, kind: input, shape index: {}]
  %s7 = inlined_call_operand.vmem [shape: f32[4,1], index: 7, kind: input, shape index: {}]
  %s8 = inlined_call_operand.vmem [shape: f32[4,36], index: 8, kind: input, shape index: {}]
  %s9 = inlined_call_operand.vmem [shape: f32[4,1], index: 9, kind: input, shape index: {}]
  %s10 = inlined_call_operand.vmem [shape: f32[4,1], index: 10, kind: input, shape index: {}]
  %s11 = inlined_call_operand.vmem [shape: f32[1,648], index: 11, kind: input, shape index: {}]
  %s12 = inlined_call_operand.hbm [shape: f32[1,4,648], index: 12, kind: output, shape index: {}]
  %s13 = sld [smem:[#allocation0]]
  $region58: #{tpu_custom_call.1} parent=0
    _
  %s15 = ssub.s32 1, %s13
  %s16 = scalar_select 0, %s15, %s13
  $region1: #{tpu_custom_call.1} parent=0
    #allocation7 [shape = 'u8[12288]{0}', space=vmem, size = 0x3000, scoped, tag = 'output window, operand 0, single buffered']
    #allocation8 [shape = 's32[1]{0}', space=sflag, size = 0x4, scoped, tag = 'scoped memory for tpu_custom_call.1']
    %17 = vsyncpa [#allocation8], 0
    // Predicated region
    $region2: #{tpu_custom_call.1} parent=1 // pred_check
      _
    $region3: #{tpu_custom_call.1} parent=1 // pred_check_branch
      %19 = sbr.rel (0) target = $region5
    $region4: #{tpu_custom_call.1} parent=1 // pred_region
      _
    $region5: #{tpu_custom_call.1} parent=1 // pred_fallthru
      _
    // Predicated region
    $region6: #{tpu_custom_call.1} parent=1 // pred_check
      _
    $region7: #{tpu_custom_call.1} parent=1 // pred_check_branch
      %21 = sbr.rel (0) target = $region9
    $region8: #{tpu_custom_call.1} parent=1 // pred_region
      _
    $region9: #{tpu_custom_call.1} parent=1 // pred_fallthru
      _
    // Predicated region
    $region10: #{tpu_custom_call.1} parent=1 // pred_check
      _
    $region11: #{tpu_custom_call.1} parent=1 // pred_check_branch
      %23 = sbr.rel (0) target = $region13
    $region12: #{tpu_custom_call.1} parent=1 // pred_region
      _
    $region13: #{tpu_custom_call.1} parent=1 // pred_fallthru
      _
    // Predicated region
    $region14: #{tpu_custom_call.1} parent=1 // pred_check
      _
    $region15: #{tpu_custom_call.1} parent=1 // pred_check_branch
      %25 = sbr.rel (0) target = $region17
    $region16: #{tpu_custom_call.1} parent=1 // pred_region
      _
    $region17: #{tpu_custom_call.1} parent=1 // pred_fallthru
      _
    // Predicated region
    $region18: #{tpu_custom_call.1} parent=1 // pred_check
      _
    $region19: #{tpu_custom_call.1} parent=1 // pred_check_branch
      %27 = sbr.rel (0) target = $region21
    $region20: #{tpu_custom_call.1} parent=1 // pred_region
      _
    $region21: #{tpu_custom_call.1} parent=1 // pred_fallthru
      _
    // Predicated region
    $region22: #{tpu_custom_call.1} parent=1 // pred_check
      _
    $region23: #{tpu_custom_call.1} parent=1 // pred_check_branch
      %29 = sbr.rel (0) target = $region25
    $region24: #{tpu_custom_call.1} parent=1 // pred_region
      _
    $region25: #{tpu_custom_call.1} parent=1 // pred_fallthru
      _
    // Predicated region
    $region26: #{tpu_custom_call.1} parent=1 // pred_check
      _
    $region27: #{tpu_custom_call.1} parent=1 // pred_check_branch
      %31 = sbr.rel (0) target = $region29
    $region28: #{tpu_custom_call.1} parent=1 // pred_region
      _
    $region29: #{tpu_custom_call.1} parent=1 // pred_fallthru
      _
    // Predicated region
    $region30: #{tpu_custom_call.1} parent=1 // pred_check
      _
    $region31: #{tpu_custom_call.1} parent=1 // pred_check_branch
      %33 = sbr.rel (0) target = $region33
    $region32: #{tpu_custom_call.1} parent=1 // pred_region
      _
    $region33: #{tpu_custom_call.1} parent=1 // pred_fallthru
      _
    // Predicated region
    $region34: #{tpu_custom_call.1} parent=1 // pred_check
      _
    $region35: #{tpu_custom_call.1} parent=1 // pred_check_branch
      %35 = sbr.rel (0) target = $region37
    $region36: #{tpu_custom_call.1} parent=1 // pred_region
      _
    $region37: #{tpu_custom_call.1} parent=1 // pred_fallthru
      _
    // Predicated region
    $region38: #{tpu_custom_call.1} parent=1 // pred_check
      _
    $region39: #{tpu_custom_call.1} parent=1 // pred_check_branch
      %37 = sbr.rel (0) target = $region41
    $region40: #{tpu_custom_call.1} parent=1 // pred_region
      _
    $region41: #{tpu_custom_call.1} parent=1 // pred_fallthru
      _
    // Predicated region
    $region42: #{tpu_custom_call.1} parent=1 // pred_check
      _
    $region43: #{tpu_custom_call.1} parent=1 // pred_check_branch
      %39 = sbr.rel (0) target = $region45
    $region44: #{tpu_custom_call.1} parent=1 // pred_region
      _
    $region45: #{tpu_custom_call.1} parent=1 // pred_fallthru
      _
    // Predicated region
    $region46: #{tpu_custom_call.1} parent=1 // pred_check
      _
    $region47: #{tpu_custom_call.1} parent=1 // pred_check_branch
      %41 = sbr.rel (0) target = $region49
    $region48: #{tpu_custom_call.1} parent=1 // pred_region
      _
    $region49: #{tpu_custom_call.1} parent=1 // pred_fallthru
      _
    %42 = vst [vmem:[#allocation3] sm:$0xff] 0.0
    %vm43 = vcmask 1047616
    %44 = vst.msk [vmem:[#allocation3 + $0x30] sm:$0xff] %vm43, 0.0
    %vm45 = vcmask 64512
    %46 = vst.msk [vmem:[#allocation3 + $0x38] sm:$0xff] %vm45, 0.0
    %47 = vst [vmem:[#allocation5] sm:$0xf] 0.0
    %vm48 = vcmask 1043520
    %vm49 = vcmask 64516
    %vm50 = vmor %vm49, %vm48
    %51 = vst.msk [vmem:[#allocation5 + $0x18] sm:$0xff] %vm50, 0.0
    %v52 = vld [vmem:[%s2] sm:$0xff]
    %v53 = vld [vmem:[%s2 + $0x8] sm:$0xff]
    %v54 = vld [vmem:[%s0] sm:$0xff]
    %v55 = vld [vmem:[%s3] sm:$0xff]
    %v56 = vld [vmem:[%s3 + $0x8] sm:$0xff]
    %58 = vset.pattern.permute.xlu0 0
    %59 = vperm.xlu0 %58, %v55
    %v60 = vpop.permute.xlu0 %59
    %63 = vset.pattern.permute.xlu0 0
    %64 = vperm.xlu0 %63, %v56
    %v65 = vpop.permute.xlu0 %64
    %v68 = vsel %vm45, %v52, 0
    %v71 = vsel %vm45, %v53, 0
    %73 = vmatprep.subr.mxu0 0.0
    %74 = vmatpush1.msra.mxu0 %v54
    %75 = vmatprep.subr.mxu0 0.0
    %76 = vmatpush1.msra.mxu0 0.0
    %77 = vmatprep.subr.mxu0 0.0
    %78 = vmatpush1.msra.mxu0 0.0
    %79 = vmatprep.subr.mxu0 0.0
    %80 = vmatpush1.msra.mxu0 0.0
    %81 = vmatprep.subr.mxu0 0.0
    %82 = vmatpush1.msra.mxu0 0.0
    %83 = vmatprep.subr.mxu0 0.0
    %84 = vmatpush1.msra.mxu0 0.0
    %85 = vmatprep.subr.mxu0 0.0
    %86 = vmatpush1.msra.mxu0 0.0
    %87 = vmatprep.subr.mxu0 0.0
    %88 = vmatpush1.msra.mxu0 0.0
    %89 = vmatprep.subr.mxu0 0.0
    %90 = vmatpush1.msra.mxu0 0.0
    %91 = vmatprep.subr.mxu0 0.0
    %92 = vmatpush1.msra.mxu0 0.0
    %93 = vmatprep.subr.mxu0 0.0
    %94 = vmatpush1.msra.mxu0 0.0
    %95 = vmatprep.subr.mxu0 0.0
    %96 = vmatpush1.msra.mxu0 0.0
    %97 = vmatprep.subr.mxu0 0.0
    %98 = vmatpush1.msra.mxu0 0.0
    %99 = vmatprep.subr.mxu0 0.0
    %100 = vmatpush1.msra.mxu0 0.0
    %101 = vmatprep.subr.mxu0 0.0
    %102 = vmatpush1.msra.mxu0 0.0
    %103 = vmatprep.subr.mxu0 0.0
    %104 = vmatpush1.msra.mxu0 0.0
    %105 = vmatprep.subr.mxu0 0.0
    %106 = vmatpush1.msra.mxu0 0.0
    %107 = vmatprep.subr.mxu0 0.0
    %108 = vmatpush1.msra.mxu0 0.0
    %109 = vmatprep.subr.mxu0 0.0
    %110 = vmatpush1.msra.mxu0 0.0
    %111 = vmatprep.subr.mxu0 0.0
    %112 = vmatpush1.msra.mxu0 0.0
    %113 = vmatprep.subr.mxu0 0.0
    %114 = vmatpush1.msra.mxu0 0.0
    %115 = vmatprep.subr.mxu0 0.0
    %116 = vmatpush1.msra.mxu0 0.0
    %117 = vmatprep.subr.mxu0 0.0
    %118 = vmatpush1.msra.mxu0 0.0
    %119 = vmatprep.subr.mxu0 0.0
    %120 = vmatpush1.msra.mxu0 0.0
    %121 = vmatprep.subr.mxu0 0.0
    %122 = vmatpush1.msra.mxu0 0.0
    %123 = vmatprep.subr.mxu0 0.0
    %124 = vmatpush1.msra.mxu0 0.0
    %125 = vmatprep.subr.mxu0 0.0
    %126 = vmatpush1.msra.mxu0 0.0
    %127 = vmatprep.subr.mxu0 0.0
    %128 = vmatpush1.msra.mxu0 0.0
    %129 = vmatprep.subr.mxu0 0.0
    %130 = vmatpush1.msra.mxu0 0.0
    %131 = vmatprep.subr.mxu0 0.0
    %132 = vmatpush1.msra.mxu0 0.0
    %133 = vmatprep.subr.mxu0 0.0
    %134 = vmatpush1.msra.mxu0 0.0
    %135 = vmatprep.subr.mxu0 0.0
    %136 = vmatpush1.msra.mxu0 0.0
    %137 = vmatprep.mubr.f32.mxu0 0.0
    %138 = vmatmul.mubr.f32.gmra.mrb[0].mxu0 %v68
    %v139 = vpop.f32.mrb[0].mxu0
    %v140 = vadd.f32 %v60, %v139
    %v141 = vpop.f32.mrb[0].mxu0
    %142 = vmatprep.mubr.f32.mxu0 0.0
    %143 = vmatmul.mubr.f32.gmra.mrb[0].mxu0 %v71
    %v144 = vpop.f32.mrb[0].mxu0
    %v145 = vadd.f32 %v65, %v144
    %v146 = vpop.f32.mrb[0].mxu0
    %147 = vdwg.mxu0
    %vm148 = vcmask 519168
    %149 = vst.msk [vmem:[#allocation2] sm:$0xf] %vm148, %v140
    %v151 = vrot.slane %v140, 4
    %152 = vrot.lane.b32.xlu0 %v151, 64
    %v153 = vpop.permute.xlu0 %152
    %vm155 = vcmask 1043968
    %156 = vst.msk [vmem:[#allocation2] sm:$0xf] %vm155, %v153
    %157 = vst.msk [vmem:[#allocation2 + $0x8] sm:$0xf] %vm148, %v145
    %v159 = vrot.slane %v145, 4
    %160 = vrot.lane.b32.xlu0 %v159, 64
    %v161 = vpop.permute.xlu0 %160
    %163 = vst.msk [vmem:[#allocation2 + $0x8] sm:$0xf] %vm155, %v161
    %vm164 = vcmask 523268
    %165 = vst.msk [vmem:[#allocation2] sm:$0xf0] %vm164, %v153
    %vm166 = vcmask 1048068
    %167 = vst.msk [vmem:[#allocation2] sm:$0xf0] %vm166, %v140
    %168 = vst.msk [vmem:[#allocation2 + $0x8] sm:$0xf0] %vm164, %v161
    %169 = vst.msk [vmem:[#allocation2 + $0x8] sm:$0xf0] %vm166, %v145
    %v170 = vld [vmem:[#allocation2] sm:$0xff]
    %v171 = vld [vmem:[#allocation2 + $0x8] sm:$0xff]
    %v172 = vld [vmem:[%s4] sm:$0xff]
    %v173 = vld [vmem:[%s4 + $0x8] sm:$0xff]
    %v174 = vld [vmem:[%s4 + $0x10] sm:$0xff]
    %v175 = vld [vmem:[%s4 + $0x18] sm:$0xff]
    %v176 = vld [vmem:[%s4 + $0x20] sm:$0xff]
    %v177 = vld [vmem:[%s4 + $0x28] sm:$0xff]
    %v178 = vld [vmem:[%s4 + $0x30] sm:$0xff]
    %v179 = vld [vmem:[%s4 + $0x38] sm:$0xff]
    %v180 = vld [vmem:[%s4 + $0x40] sm:$0xff]
    %v181 = vld [vmem:[%s4 + $0x48] sm:$0xff]
    %v182 = vld [vmem:[%s4 + $0x50] sm:$0xff]
    %v183 = vld [vmem:[%s4 + $0x58] sm:$0xff]
    %v184 = vld [vmem:[%s4 + $0x60] sm:$0xff]
    %v185 = vld [vmem:[%s4 + $0x68] sm:$0xff]
    %v186 = vld [vmem:[%s4 + $0x70] sm:$0xff]
    %v187 = vld [vmem:[%s4 + $0x78] sm:$0xff]
    %v188 = vld [vmem:[%s4 + $0x80] sm:$0xff]
    %v189 = vld [vmem:[%s4 + $0x88] sm:$0xff]
    %v190 = vld [vmem:[%s4 + $0x90] sm:$0xff]
    %v191 = vld [vmem:[%s4 + $0x98] sm:$0xff]
    %v192 = vld [vmem:[%s4 + $0xa0] sm:$0xff]
    %v193 = vld [vmem:[%s4 + $0xa8] sm:$0xff]
    %v194 = vld [vmem:[%s4 + $0xb0] sm:$0xff]
    %v195 = vld [vmem:[%s4 + $0xb8] sm:$0xff]
    %v196 = vld [vmem:[%s4 + $0xc0] sm:$0xff]
    %v197 = vld [vmem:[%s4 + $0xc8] sm:$0xff]
    %v198 = vld [vmem:[%s4 + $0xd0] sm:$0xff]
    %v199 = vld [vmem:[%s4 + $0xd8] sm:$0xff]
    %v200 = vld [vmem:[%s4 + $0xe0] sm:$0xff]
    %v201 = vld [vmem:[%s4 + $0xe8] sm:$0xff]
    %v202 = vld [vmem:[%s4 + $0xf0] sm:$0xff]
    %v203 = vld [vmem:[%s4 + $0xf8] sm:$0xff]
    %v204 = vld [vmem:[%s4 + $0x100] sm:$0xff]
    %v205 = vld [vmem:[%s4 + $0x108] sm:$0xff]
    %v206 = vld [vmem:[%s4 + $0x110] sm:$0xff]
    %v207 = vld [vmem:[%s4 + $0x118] sm:$0xff]
    %v208 = vld [vmem:[%s4 + $0x120] sm:$0xff]
    %v209 = vld [vmem:[%s4 + $0x128] sm:$0xff]
    %v210 = vld [vmem:[%s4 + $0x130] sm:$0xff]
    %v211 = vld [vmem:[%s4 + $0x138] sm:$0xff]
    %v212 = vld [vmem:[%s4 + $0x140] sm:$0xff]
    %v213 = vld [vmem:[%s4 + $0x148] sm:$0xff]
    %v214 = vld [vmem:[%s4 + $0x150] sm:$0xff]
    %v215 = vld [vmem:[%s4 + $0x158] sm:$0xff]
    %v216 = vld [vmem:[%s4 + $0x160] sm:$0xff]
    %v217 = vld [vmem:[%s4 + $0x168] sm:$0xff]
    %v218 = vld [vmem:[%s4 + $0x170] sm:$0xff]
    %v219 = vld [vmem:[%s4 + $0x178] sm:$0xff]
    %v220 = vld [vmem:[%s4 + $0x180] sm:$0xff]
    %v221 = vld [vmem:[%s4 + $0x188] sm:$0xff]
    %v222 = vld [vmem:[%s4 + $0x190] sm:$0xff]
    %v223 = vld [vmem:[%s4 + $0x198] sm:$0xff]
    %v224 = vld [vmem:[%s4 + $0x1a0] sm:$0xff]
    %v225 = vld [vmem:[%s4 + $0x1a8] sm:$0xff]
    %v226 = vld [vmem:[%s4 + $0x1b0] sm:$0xff]
    %v227 = vld [vmem:[%s4 + $0x1b8] sm:$0xff]
    %v228 = vld [vmem:[%s4 + $0x1c0] sm:$0xff]
    %v229 = vld [vmem:[%s4 + $0x1c8] sm:$0xff]
    %v230 = vld [vmem:[%s4 + $0x1d0] sm:$0xff]
    %v231 = vld [vmem:[%s4 + $0x1d8] sm:$0xff]
    %v232 = vld [vmem:[%s4 + $0x1e0] sm:$0xff]
    %v233 = vld [vmem:[%s4 + $0x1e8] sm:$0xff]
    %v234 = vld [vmem:[%s4 + $0x1f0] sm:$0xff]
    %v235 = vld [vmem:[%s4 + $0x1f8] sm:$0xff]
    %v236 = vld [vmem:[%s4 + $0x200] sm:$0xff]
    %v237 = vld [vmem:[%s4 + $0x208] sm:$0xff]
    %v238 = vld [vmem:[%s4 + $0x210] sm:$0xff]
    %v239 = vld [vmem:[%s4 + $0x218] sm:$0xff]
    %v240 = vld [vmem:[%s4 + $0x220] sm:$0xff]
    %v241 = vld [vmem:[%s4 + $0x228] sm:$0xff]
    %v242 = vld [vmem:[%s4 + $0x230] sm:$0xff]
    %v243 = vld [vmem:[%s4 + $0x238] sm:$0xff]
    %v244 = vld [vmem:[%s4 + $0x240] sm:$0xff]
    %v245 = vld [vmem:[%s4 + $0x248] sm:$0xff]
    %v246 = vld [vmem:[%s4 + $0x250] sm:$0xff]
    %v247 = vld [vmem:[%s4 + $0x258] sm:$0xff]
    %v248 = vld [vmem:[%s4 + $0x260] sm:$0xff]
    %v249 = vld [vmem:[%s4 + $0x268] sm:$0xff]
    %v250 = vld [vmem:[%s4 + $0x270] sm:$0xff]
    %v251 = vld [vmem:[%s4 + $0x278] sm:$0xff]
    %v252 = vld [vmem:[%s4 + $0x280] sm:$0xff]
    %v253 = vld [vmem:[%s4 + $0x288] sm:$0xff]
    %v254 = vld [vmem:[%s4 + $0x290] sm:$0xff]
    %v255 = vld [vmem:[%s4 + $0x298] sm:$0xff]
    %v256 = vld [vmem:[%s4 + $0x2a0] sm:$0xff]
    %v257 = vld [vmem:[%s4 + $0x2a8] sm:$0xff]
    %v258 = vld [vmem:[%s4 + $0x2b0] sm:$0xff]
    %v259 = vld [vmem:[%s4 + $0x2b8] sm:$0xff]
    %v260 = vld [vmem:[%s4 + $0x2c0] sm:$0xff]
    %v261 = vld [vmem:[%s4 + $0x2c8] sm:$0xff]
    %v262 = vld [vmem:[%s4 + $0x2d0] sm:$0xff]
    %v263 = vld [vmem:[%s4 + $0x2d8] sm:$0xff]
    %v264 = vld [vmem:[%s4 + $0x2e0] sm:$0xff]
    %v265 = vld [vmem:[%s4 + $0x2e8] sm:$0xff]
    %v266 = vld [vmem:[%s4 + $0x2f0] sm:$0xff]
    %v267 = vld [vmem:[%s4 + $0x2f8] sm:$0xff]
    %268 = vmatprep.subr.mxu0 %v173
    %269 = vmatpush1.msra.mxu0 %v172
    %270 = vmatprep.subr.mxu0 %v176
    %271 = vmatpush1.msra.mxu0 %v175
    %272 = vmatprep.subr.mxu0 %v179
    %273 = vmatpush1.msra.mxu0 %v178
    %274 = vmatprep.subr.mxu0 %v182
    %275 = vmatpush1.msra.mxu0 %v181
    %276 = vmatprep.subr.mxu0 %v185
    %277 = vmatpush1.msra.mxu0 %v184
    %278 = vmatprep.subr.mxu0 %v188
    %279 = vmatpush1.msra.mxu0 %v187
    %280 = vmatprep.subr.mxu0 %v191
    %281 = vmatpush1.msra.mxu0 %v190
    %282 = vmatprep.subr.mxu0 %v194
    %283 = vmatpush1.msra.mxu0 %v193
    %284 = vmatprep.subr.mxu0 %v197
    %285 = vmatpush1.msra.mxu0 %v196
    %286 = vmatprep.subr.mxu0 %v200
    %287 = vmatpush1.msra.mxu0 %v199
    %288 = vmatprep.subr.mxu0 %v203
    %289 = vmatpush1.msra.mxu0 %v202
    %290 = vmatprep.subr.mxu0 %v206
    %291 = vmatpush1.msra.mxu0 %v205
    %292 = vmatprep.subr.mxu0 %v209
    %293 = vmatpush1.msra.mxu0 %v208
    %294 = vmatprep.subr.mxu0 %v212
    %295 = vmatpush1.msra.mxu0 %v211
    %296 = vmatprep.subr.mxu0 %v215
    %297 = vmatpush1.msra.mxu0 %v214
    %298 = vmatprep.subr.mxu0 %v218
    %299 = vmatpush1.msra.mxu0 %v217
    %300 = vmatprep.subr.mxu0 %v221
    %301 = vmatpush1.msra.mxu0 %v220
    %302 = vmatprep.subr.mxu0 %v224
    %303 = vmatpush1.msra.mxu0 %v223
    %304 = vmatprep.subr.mxu0 %v227
    %305 = vmatpush1.msra.mxu0 %v226
    %306 = vmatprep.subr.mxu0 %v230
    %307 = vmatpush1.msra.mxu0 %v229
    %308 = vmatprep.subr.mxu0 %v233
    %309 = vmatpush1.msra.mxu0 %v232
    %310 = vmatprep.subr.mxu0 %v236
    %311 = vmatpush1.msra.mxu0 %v235
    %312 = vmatprep.subr.mxu0 %v239
    %313 = vmatpush1.msra.mxu0 %v238
    %314 = vmatprep.subr.mxu0 %v242
    %315 = vmatpush1.msra.mxu0 %v241
    %316 = vmatprep.subr.mxu0 %v245
    %317 = vmatpush1.msra.mxu0 %v244
    %318 = vmatprep.subr.mxu0 %v248
    %319 = vmatpush1.msra.mxu0 %v247
    %320 = vmatprep.subr.mxu0 %v251
    %321 = vmatpush1.msra.mxu0 %v250
    %322 = vmatprep.subr.mxu0 %v254
    %323 = vmatpush1.msra.mxu0 %v253
    %324 = vmatprep.subr.mxu0 %v257
    %325 = vmatpush1.msra.mxu0 %v256
    %326 = vmatprep.subr.mxu0 %v260
    %327 = vmatpush1.msra.mxu0 %v259
    %328 = vmatprep.subr.mxu0 %v263
    %329 = vmatpush1.msra.mxu0 %v262
    %330 = vmatprep.subr.mxu0 %v266
    %331 = vmatpush1.msra.mxu0 %v265
    %332 = vmatprep.mubr.f32.mxu0 %v171
    %333 = vmatmul.mubr.f32.gmra.mrb[0].mxu0 %v170
    %v334 = vpop.f32.mrb[0].mxu0
    %v335 = vadd.f32 0.0, %v334
    %v336 = vpop.f32.mrb[0].mxu0
    %v337 = vadd.f32 0.0, %v336
    %338 = vdwg.mxu0
    %339 = vmatprep.subr.mxu0 0.0
    %340 = vmatpush1.msra.mxu0 %v174
    %341 = vmatprep.subr.mxu0 0.0
    %342 = vmatpush1.msra.mxu0 %v177
    %343 = vmatprep.subr.mxu0 0.0
    %344 = vmatpush1.msra.mxu0 %v180
    %345 = vmatprep.subr.mxu0 0.0
    %346 = vmatpush1.msra.mxu0 %v183
    %347 = vmatprep.subr.mxu0 0.0
    %348 = vmatpush1.msra.mxu0 %v186
    %349 = vmatprep.subr.mxu0 0.0
    %350 = vmatpush1.msra.mxu0 %v189
    %351 = vmatprep.subr.mxu0 0.0
    %352 = vmatpush1.msra.mxu0 %v192
    %353 = vmatprep.subr.mxu0 0.0
    %354 = vmatpush1.msra.mxu0 %v195
    %355 = vmatprep.subr.mxu0 0.0
    %356 = vmatpush1.msra.mxu0 %v198
    %357 = vmatprep.subr.mxu0 0.0
    %358 = vmatpush1.msra.mxu0 %v201
    %359 = vmatprep.subr.mxu0 0.0
    %360 = vmatpush1.msra.mxu0 %v204
    %361 = vmatprep.subr.mxu0 0.0
    %362 = vmatpush1.msra.mxu0 %v207
    %363 = vmatprep.subr.mxu0 0.0
    %364 = vmatpush1.msra.mxu0 %v210
    %365 = vmatprep.subr.mxu0 0.0
    %366 = vmatpush1.msra.mxu0 %v213
    %367 = vmatprep.subr.mxu0 0.0
    %368 = vmatpush1.msra.mxu0 %v216
    %369 = vmatprep.subr.mxu0 0.0
    %370 = vmatpush1.msra.mxu0 %v219
    %371 = vmatprep.subr.mxu0 0.0
    %372 = vmatpush1.msra.mxu0 %v222
    %373 = vmatprep.subr.mxu0 0.0
    %374 = vmatpush1.msra.mxu0 %v225
    %375 = vmatprep.subr.mxu0 0.0
    %376 = vmatpush1.msra.mxu0 %v228
    %377 = vmatprep.subr.mxu0 0.0
    %378 = vmatpush1.msra.mxu0 %v231
    %379 = vmatprep.subr.mxu0 0.0
    %380 = vmatpush1.msra.mxu0 %v234
    %381 = vmatprep.subr.mxu0 0.0
    %382 = vmatpush1.msra.mxu0 %v237
    %383 = vmatprep.subr.mxu0 0.0
    %384 = vmatpush1.msra.mxu0 %v240
    %385 = vmatprep.subr.mxu0 0.0
    %386 = vmatpush1.msra.mxu0 %v243
    %387 = vmatprep.subr.mxu0 0.0
    %388 = vmatpush1.msra.mxu0 %v246
    %389 = vmatprep.subr.mxu0 0.0
    %390 = vmatpush1.msra.mxu0 %v249
    %391 = vmatprep.subr.mxu0 0.0
    %392 = vmatpush1.msra.mxu0 %v252
    %393 = vmatprep.subr.mxu0 0.0
    %394 = vmatpush1.msra.mxu0 %v255
    %395 = vmatprep.subr.mxu0 0.0
    %396 = vmatpush1.msra.mxu0 %v258
    %397 = vmatprep.subr.mxu0 0.0
    %398 = vmatpush1.msra.mxu0 %v261
    %399 = vmatprep.subr.mxu0 0.0
    %400 = vmatpush1.msra.mxu0 %v264
    %401 = vmatprep.subr.mxu0 0.0
    %402 = vmatpush1.msra.mxu0 %v267
    %403 = vmatprep.mubr.f32.mxu0 %v171
    %404 = vmatmul.mubr.f32.gmra.mrb[0].mxu0 %v170
    %v405 = vpop.f32.mrb[0].mxu0
    %v406 = vadd.f32 0.0, %v405
    %v407 = vpop.f32.mrb[0].mxu0
    %408 = vdwg.mxu0
    %v409 = vld [vmem:[%s1] sm:$0xff]
    %v410 = vld [vmem:[%s1 + $0x8] sm:$0xff]
    %v411 = vld [vmem:[%s1 + $0x10] sm:$0xff]
    %v415 = vcombine.high %v409, %v409
    %v416 = vcombine.high %v410, %v410
    %v417 = vcombine.high %v411, %v411
    %421 = vst [vmem:[#allocation3 + $0x8] sm:$0xf] %v409
    %422 = vst [vmem:[#allocation3 + $0x10] sm:$0xf] %v415
    %423 = vst [vmem:[#allocation3 + $0x18] sm:$0xf] %v410
    %424 = vst [vmem:[#allocation3 + $0x20] sm:$0xf] %v416
    %425 = vst [vmem:[#allocation3 + $0x28] sm:$0xf] %v411
    %vm426 = vcmask 60416
    %427 = vst.msk [vmem:[#allocation3 + $0x30] sm:$0xf] %vm426, %v417
    %v431 = vrot.slane %v335, 4
    %v432 = vrot.slane %v337, 4
    %v433 = vrot.slane %v406, 4
    %437 = vst [vmem:[#allocation3 + $0x8] sm:$0xf0] %v431
    %438 = vst [vmem:[#allocation3 + $0x10] sm:$0xf0] %v432
    %vm439 = vcmask 556036
    %440 = vst.msk [vmem:[#allocation3 + $0x18] sm:$0xf0] %vm439, %v433
    %441 = vrot.lane.b32.xlu0 %v335, 68
    %v442 = vpop.permute.xlu0 %441
    %443 = vrot.lane.b32.xlu0 %v337, 68
    %v444 = vpop.permute.xlu0 %443
    %445 = vrot.lane.b32.xlu0 %v406, 68
    %v446 = vpop.permute.xlu0 %445
    %vm447 = vcmask 556032
    %v448 = vsel %vm447, %v442, %v444
    %v449 = vsel %vm447, %v444, %v446
    %vm454 = vcmask 1048100
    %455 = vst.msk [vmem:[#allocation3 + $0x18] sm:$0xf0] %vm454, %v442
    %456 = vst [vmem:[#allocation3 + $0x20] sm:$0xf0] %v448
    %457 = vst [vmem:[#allocation3 + $0x28] sm:$0xf0] %v449
    %458 = vst.msk [vmem:[#allocation3 + $0x30] sm:$0xf0] %vm49, %v446
    %v459 = vld [vmem:[#allocation3] sm:$0xff]
    %v460 = vld [vmem:[#allocation3 + $0x8] sm:$0xff]
    %v461 = vld [vmem:[#allocation3 + $0x10] sm:$0xff]
    %v462 = vld [vmem:[#allocation3 + $0x18] sm:$0xff]
    %v463 = vld [vmem:[#allocation3 + $0x20] sm:$0xff]
    %v464 = vld [vmem:[#allocation3 + $0x28] sm:$0xff]
    %471 = vrot.lane.b32.xlu0 %v459, 19
    %v472 = vpop.permute.xlu0 %471
    %473 = vrot.lane.b32.xlu0 %v460, 19
    %v474 = vpop.permute.xlu0 %473
    %475 = vrot.lane.b32.xlu0 %v461, 19
    %v476 = vpop.permute.xlu0 %475
    %477 = vrot.lane.b32.xlu0 %v462, 19
    %v478 = vpop.permute.xlu0 %477
    %479 = vrot.lane.b32.xlu0 %v463, 19
    %v480 = vpop.permute.xlu0 %479
    %481 = vrot.lane.b32.xlu0 %v464, 19
    %v482 = vpop.permute.xlu0 %481
    %vm483 = vcmask 154624
    %v484 = vsel %vm483, %v472, %v474
    %v485 = vsel %vm483, %v474, %v476
    %v486 = vsel %vm483, %v476, %v478
    %v487 = vsel %vm483, %v478, %v480
    %v488 = vsel %vm483, %v480, %v482
    %495 = vst [vmem:[#allocation4] sm:$0xff] %v484
    %496 = vst [vmem:[#allocation4 + $0x8] sm:$0xff] %v485
    %497 = vst [vmem:[#allocation4 + $0x10] sm:$0xff] %v486
    %498 = vst [vmem:[#allocation4 + $0x18] sm:$0xff] %v487
    %499 = vst [vmem:[#allocation4 + $0x20] sm:$0xff] %v488
    %500 = vst.msk [vmem:[#allocation4 + $0x28] sm:$0xff] %vm45, %v482
    %v501 = vld [vmem:[#allocation3] sm:$0xff]
    %v502 = vld [vmem:[#allocation3 + $0x8] sm:$0xff]
    %v503 = vld [vmem:[#allocation3 + $0x10] sm:$0xff]
    %v504 = vld [vmem:[#allocation3 + $0x18] sm:$0xff]
    %v505 = vld [vmem:[#allocation3 + $0x20] sm:$0xff]
    %v506 = vld [vmem:[#allocation3 + $0x28] sm:$0xff]
    %513 = vrot.lane.b32.xlu0 %v501, 18
    %v514 = vpop.permute.xlu0 %513
    %515 = vrot.lane.b32.xlu0 %v502, 18
    %v516 = vpop.permute.xlu0 %515
    %517 = vrot.lane.b32.xlu0 %v503, 18
    %v518 = vpop.permute.xlu0 %517
    %519 = vrot.lane.b32.xlu0 %v504, 18
    %v520 = vpop.permute.xlu0 %519
    %521 = vrot.lane.b32.xlu0 %v505, 18
    %v522 = vpop.permute.xlu0 %521
    %523 = vrot.lane.b32.xlu0 %v506, 18
    %v524 = vpop.permute.xlu0 %523
    %vm525 = vcmask 146432
    %v526 = vsel %vm525, %v514, %v516
    %v527 = vsel %vm525, %v516, %v518
    %v528 = vsel %vm525, %v518, %v520
    %v529 = vsel %vm525, %v520, %v522
    %v530 = vsel %vm525, %v522, %v524
    %537 = vst [vmem:[#allocation4 + $0x30] sm:$0xff] %v526
    %538 = vst [vmem:[#allocation4 + $0x38] sm:$0xff] %v527
    %539 = vst [vmem:[#allocation4 + $0x40] sm:$0xff] %v528
    %540 = vst [vmem:[#allocation4 + $0x48] sm:$0xff] %v529
    %541 = vst [vmem:[#allocation4 + $0x50] sm:$0xff] %v530
    %542 = vst.msk [vmem:[#allocation4 + $0x58] sm:$0xff] %vm45, %v524
    %v543 = vld [vmem:[#allocation3] sm:$0xff]
    %v544 = vld [vmem:[#allocation3 + $0x8] sm:$0xff]
    %v545 = vld [vmem:[#allocation3 + $0x10] sm:$0xff]
    %v546 = vld [vmem:[#allocation3 + $0x18] sm:$0xff]
    %v547 = vld [vmem:[#allocation3 + $0x20] sm:$0xff]
    %v548 = vld [vmem:[#allocation3 + $0x28] sm:$0xff]
    %555 = vrot.lane.b32.xlu0 %v543, 17
    %v556 = vpop.permute.xlu0 %555
    %557 = vrot.lane.b32.xlu0 %v544, 17
    %v558 = vpop.permute.xlu0 %557
    %559 = vrot.lane.b32.xlu0 %v545, 17
    %v560 = vpop.permute.xlu0 %559
    %561 = vrot.lane.b32.xlu0 %v546, 17
    %v562 = vpop.permute.xlu0 %561
    %563 = vrot.lane.b32.xlu0 %v547, 17
    %v564 = vpop.permute.xlu0 %563
    %565 = vrot.lane.b32.xlu0 %v548, 17
    %v566 = vpop.permute.xlu0 %565
    %vm567 = vcmask 138240
    %v568 = vsel %vm567, %v556, %v558
    %v569 = vsel %vm567, %v558, %v560
    %v570 = vsel %vm567, %v560, %v562
    %v571 = vsel %vm567, %v562, %v564
    %v572 = vsel %vm567, %v564, %v566
    %579 = vst [vmem:[#allocation4 + $0x60] sm:$0xff] %v568
    %580 = vst [vmem:[#allocation4 + $0x68] sm:$0xff] %v569
    %581 = vst [vmem:[#allocation4 + $0x70] sm:$0xff] %v570
    %582 = vst [vmem:[#allocation4 + $0x78] sm:$0xff] %v571
    %583 = vst [vmem:[#allocation4 + $0x80] sm:$0xff] %v572
    %584 = vst.msk [vmem:[#allocation4 + $0x88] sm:$0xff] %vm45, %v566
    %v585 = vld [vmem:[#allocation3] sm:$0xff]
    %v586 = vld [vmem:[#allocation3 + $0x8] sm:$0xff]
    %v587 = vld [vmem:[#allocation3 + $0x10] sm:$0xff]
    %v588 = vld [vmem:[#allocation3 + $0x18] sm:$0xff]
    %v589 = vld [vmem:[#allocation3 + $0x20] sm:$0xff]
    %v590 = vld [vmem:[#allocation3 + $0x28] sm:$0xff]
    %v591 = vld [vmem:[#allocation3 + $0x30] sm:$0xff]
    %599 = vrot.lane.b32.xlu0 %v585, 1
    %v600 = vpop.permute.xlu0 %599
    %601 = vrot.lane.b32.xlu0 %v586, 1
    %v602 = vpop.permute.xlu0 %601
    %603 = vrot.lane.b32.xlu0 %v587, 1
    %v604 = vpop.permute.xlu0 %603
    %605 = vrot.lane.b32.xlu0 %v588, 1
    %v606 = vpop.permute.xlu0 %605
    %607 = vrot.lane.b32.xlu0 %v589, 1
    %v608 = vpop.permute.xlu0 %607
    %609 = vrot.lane.b32.xlu0 %v590, 1
    %v610 = vpop.permute.xlu0 %609
    %611 = vrot.lane.b32.xlu0 %v591, 1
    %v612 = vpop.permute.xlu0 %611
    %vm613 = vcmask 7168
    %v614 = vsel %vm613, %v600, %v602
    %v615 = vsel %vm613, %v602, %v604
    %v616 = vsel %vm613, %v604, %v606
    %v617 = vsel %vm613, %v606, %v608
    %v618 = vsel %vm613, %v608, %v610
    %v619 = vsel %vm613, %v610, %v612
    %626 = vst [vmem:[#allocation4 + $0x90] sm:$0xff] %v614
    %627 = vst [vmem:[#allocation4 + $0x98] sm:$0xff] %v615
    %628 = vst [vmem:[#allocation4 + $0xa0] sm:$0xff] %v616
    %629 = vst [vmem:[#allocation4 + $0xa8] sm:$0xff] %v617
    %630 = vst [vmem:[#allocation4 + $0xb0] sm:$0xff] %v618
    %631 = vst.msk [vmem:[#allocation4 + $0xb8] sm:$0xff] %vm45, %v619
    %v632 = vld [vmem:[#allocation3 + $0x8] sm:$0xff]
    %v633 = vld [vmem:[#allocation3 + $0x10] sm:$0xff]
    %v634 = vld [vmem:[#allocation3 + $0x18] sm:$0xff]
    %v635 = vld [vmem:[#allocation3 + $0x20] sm:$0xff]
    %v636 = vld [vmem:[#allocation3 + $0x28] sm:$0xff]
    %v637 = vld [vmem:[#allocation3 + $0x30] sm:$0xff]
    %638 = vst [vmem:[#allocation4 + $0xc0] sm:$0xff] %v632
    %639 = vst [vmem:[#allocation4 + $0xc8] sm:$0xff] %v633
    %640 = vst [vmem:[#allocation4 + $0xd0] sm:$0xff] %v634
    %641 = vst [vmem:[#allocation4 + $0xd8] sm:$0xff] %v635
    %642 = vst [vmem:[#allocation4 + $0xe0] sm:$0xff] %v636
    %643 = vst.msk [vmem:[#allocation4 + $0xe8] sm:$0xff] %vm45, %v637
    %v644 = vld [vmem:[#allocation3 + $0x8] sm:$0xff]
    %v645 = vld [vmem:[#allocation3 + $0x10] sm:$0xff]
    %v646 = vld [vmem:[#allocation3 + $0x18] sm:$0xff]
    %v647 = vld [vmem:[#allocation3 + $0x20] sm:$0xff]
    %v648 = vld [vmem:[#allocation3 + $0x28] sm:$0xff]
    %v649 = vld [vmem:[#allocation3 + $0x30] sm:$0xff]
    %656 = vrot.lane.b32.xlu0 %v644, 127
    %v657 = vpop.permute.xlu0 %656
    %658 = vrot.lane.b32.xlu0 %v645, 127
    %v659 = vpop.permute.xlu0 %658
    %660 = vrot.lane.b32.xlu0 %v646, 127
    %v661 = vpop.permute.xlu0 %660
    %662 = vrot.lane.b32.xlu0 %v647, 127
    %v663 = vpop.permute.xlu0 %662
    %664 = vrot.lane.b32.xlu0 %v648, 127
    %v665 = vpop.permute.xlu0 %664
    %666 = vrot.lane.b32.xlu0 %v649, 127
    %v667 = vpop.permute.xlu0 %666
    %vm668 = vcmask 1039360
    %v669 = vsel %vm668, %v657, %v659
    %v670 = vsel %vm668, %v659, %v661
    %v671 = vsel %vm668, %v661, %v663
    %v672 = vsel %vm668, %v663, %v665
    %v673 = vsel %vm668, %v665, %v667
    %680 = vst [vmem:[#allocation4 + $0xf0] sm:$0xff] %v669
    %681 = vst [vmem:[#allocation4 + $0xf8] sm:$0xff] %v670
    %682 = vst [vmem:[#allocation4 + $0x100] sm:$0xff] %v671
    %683 = vst [vmem:[#allocation4 + $0x108] sm:$0xff] %v672
    %684 = vst [vmem:[#allocation4 + $0x110] sm:$0xff] %v673
    %685 = vst.msk [vmem:[#allocation4 + $0x118] sm:$0xff] %vm45, %v667
    %v686 = vld [vmem:[#allocation3 + $0x8] sm:$0xff]
    %v687 = vld [vmem:[#allocation3 + $0x10] sm:$0xff]
    %v688 = vld [vmem:[#allocation3 + $0x18] sm:$0xff]
    %v689 = vld [vmem:[#allocation3 + $0x20] sm:$0xff]
    %v690 = vld [vmem:[#allocation3 + $0x28] sm:$0xff]
    %v691 = vld [vmem:[#allocation3 + $0x30] sm:$0xff]
    %698 = vrot.lane.b32.xlu0 %v686, 111
    %v699 = vpop.permute.xlu0 %698
    %700 = vrot.lane.b32.xlu0 %v687, 111
    %v701 = vpop.permute.xlu0 %700
    %702 = vrot.lane.b32.xlu0 %v688, 111
    %v703 = vpop.permute.xlu0 %702
    %704 = vrot.lane.b32.xlu0 %v689, 111
    %v705 = vpop.permute.xlu0 %704
    %706 = vrot.lane.b32.xlu0 %v690, 111
    %v707 = vpop.permute.xlu0 %706
    %708 = vrot.lane.b32.xlu0 %v691, 111
    %v709 = vpop.permute.xlu0 %708
    %vm710 = vcmask 908288
    %v711 = vsel %vm710, %v699, %v701
    %v712 = vsel %vm710, %v701, %v703
    %v713 = vsel %vm710, %v703, %v705
    %v714 = vsel %vm710, %v705, %v707
    %v715 = vsel %vm710, %v707, %v709
    %722 = vst [vmem:[#allocation4 + $0x120] sm:$0xff] %v711
    %723 = vst [vmem:[#allocation4 + $0x128] sm:$0xff] %v712
    %724 = vst [vmem:[#allocation4 + $0x130] sm:$0xff] %v713
    %725 = vst [vmem:[#allocation4 + $0x138] sm:$0xff] %v714
    %726 = vst [vmem:[#allocation4 + $0x140] sm:$0xff] %v715
    %727 = vst.msk [vmem:[#allocation4 + $0x148] sm:$0xff] %vm45, %v709
    %v728 = vld [vmem:[#allocation3 + $0x8] sm:$0xff]
    %v729 = vld [vmem:[#allocation3 + $0x10] sm:$0xff]
    %v730 = vld [vmem:[#allocation3 + $0x18] sm:$0xff]
    %v731 = vld [vmem:[#allocation3 + $0x20] sm:$0xff]
    %v732 = vld [vmem:[#allocation3 + $0x28] sm:$0xff]
    %v733 = vld [vmem:[#allocation3 + $0x30] sm:$0xff]
    %740 = vrot.lane.b32.xlu0 %v728, 110
    %v741 = vpop.permute.xlu0 %740
    %742 = vrot.lane.b32.xlu0 %v729, 110
    %v743 = vpop.permute.xlu0 %742
    %744 = vrot.lane.b32.xlu0 %v730, 110
    %v745 = vpop.permute.xlu0 %744
    %746 = vrot.lane.b32.xlu0 %v731, 110
    %v747 = vpop.permute.xlu0 %746
    %748 = vrot.lane.b32.xlu0 %v732, 110
    %v749 = vpop.permute.xlu0 %748
    %750 = vrot.lane.b32.xlu0 %v733, 110
    %v751 = vpop.permute.xlu0 %750
    %vm752 = vcmask 900096
    %v753 = vsel %vm752, %v741, %v743
    %v754 = vsel %vm752, %v743, %v745
    %v755 = vsel %vm752, %v745, %v747
    %v756 = vsel %vm752, %v747, %v749
    %v757 = vsel %vm752, %v749, %v751
    %764 = vst [vmem:[#allocation4 + $0x150] sm:$0xff] %v753
    %765 = vst [vmem:[#allocation4 + $0x158] sm:$0xff] %v754
    %766 = vst [vmem:[#allocation4 + $0x160] sm:$0xff] %v755
    %767 = vst [vmem:[#allocation4 + $0x168] sm:$0xff] %v756
    %768 = vst [vmem:[#allocation4 + $0x170] sm:$0xff] %v757
    %769 = vst.msk [vmem:[#allocation4 + $0x178] sm:$0xff] %vm45, %v751
    %v770 = vld [vmem:[#allocation3 + $0x8] sm:$0xff]
    %v771 = vld [vmem:[#allocation3 + $0x10] sm:$0xff]
    %v772 = vld [vmem:[#allocation3 + $0x18] sm:$0xff]
    %v773 = vld [vmem:[#allocation3 + $0x20] sm:$0xff]
    %v774 = vld [vmem:[#allocation3 + $0x28] sm:$0xff]
    %v775 = vld [vmem:[#allocation3 + $0x30] sm:$0xff]
    %782 = vrot.lane.b32.xlu0 %v770, 109
    %v783 = vpop.permute.xlu0 %782
    %784 = vrot.lane.b32.xlu0 %v771, 109
    %v785 = vpop.permute.xlu0 %784
    %786 = vrot.lane.b32.xlu0 %v772, 109
    %v787 = vpop.permute.xlu0 %786
    %788 = vrot.lane.b32.xlu0 %v773, 109
    %v789 = vpop.permute.xlu0 %788
    %790 = vrot.lane.b32.xlu0 %v774, 109
    %v791 = vpop.permute.xlu0 %790
    %792 = vrot.lane.b32.xlu0 %v775, 109
    %v793 = vpop.permute.xlu0 %792
    %vm794 = vcmask 891904
    %v795 = vsel %vm794, %v783, %v785
    %v796 = vsel %vm794, %v785, %v787
    %v797 = vsel %vm794, %v787, %v789
    %v798 = vsel %vm794, %v789, %v791
    %v799 = vsel %vm794, %v791, %v793
    %806 = vst [vmem:[#allocation4 + $0x180] sm:$0xff] %v795
    %807 = vst [vmem:[#allocation4 + $0x188] sm:$0xff] %v796
    %808 = vst [vmem:[#allocation4 + $0x190] sm:$0xff] %v797
    %809 = vst [vmem:[#allocation4 + $0x198] sm:$0xff] %v798
    %810 = vst [vmem:[#allocation4 + $0x1a0] sm:$0xff] %v799
    %811 = vst.msk [vmem:[#allocation4 + $0x1a8] sm:$0xff] %vm45, %v793
    %v812 = vld [vmem:[%s5] sm:$0xf]
    %v813 = vld [vmem:[#allocation4] sm:$0xff]
    %v814 = vld [vmem:[#allocation4 + $0x8] sm:$0xff]
    %v815 = vld [vmem:[#allocation4 + $0x10] sm:$0xff]
    %v816 = vld [vmem:[#allocation4 + $0x18] sm:$0xff]
    %v817 = vld [vmem:[#allocation4 + $0x20] sm:$0xff]
    %v818 = vld [vmem:[#allocation4 + $0x28] sm:$0xff]
    %v819 = vld [vmem:[#allocation4 + $0x30] sm:$0xff]
    %v820 = vld [vmem:[#allocation4 + $0x38] sm:$0xff]
    %v821 = vld [vmem:[#allocation4 + $0x40] sm:$0xff]
    %v822 = vld [vmem:[#allocation4 + $0x48] sm:$0xff]
    %v823 = vld [vmem:[#allocation4 + $0x50] sm:$0xff]
    %v824 = vld [vmem:[#allocation4 + $0x58] sm:$0xff]
    %v825 = vld [vmem:[#allocation4 + $0x60] sm:$0xff]
    %v826 = vld [vmem:[#allocation4 + $0x68] sm:$0xff]
    %v827 = vld [vmem:[#allocation4 + $0x70] sm:$0xff]
    %v828 = vld [vmem:[#allocation4 + $0x78] sm:$0xff]
    %v829 = vld [vmem:[#allocation4 + $0x80] sm:$0xff]
    %v830 = vld [vmem:[#allocation4 + $0x88] sm:$0xff]
    %v831 = vld [vmem:[#allocation4 + $0x90] sm:$0xff]
    %v832 = vld [vmem:[#allocation4 + $0x98] sm:$0xff]
    %v833 = vld [vmem:[#allocation4 + $0xa0] sm:$0xff]
    %v834 = vld [vmem:[#allocation4 + $0xa8] sm:$0xff]
    %v835 = vld [vmem:[#allocation4 + $0xb0] sm:$0xff]
    %v836 = vld [vmem:[#allocation4 + $0xb8] sm:$0xff]
    %v837 = vld [vmem:[#allocation4 + $0xc0] sm:$0xff]
    %v838 = vld [vmem:[#allocation4 + $0xc8] sm:$0xff]
    %v839 = vld [vmem:[#allocation4 + $0xd0] sm:$0xff]
    %v840 = vld [vmem:[#allocation4 + $0xd8] sm:$0xff]
    %v841 = vld [vmem:[#allocation4 + $0xe0] sm:$0xff]
    %v842 = vld [vmem:[#allocation4 + $0xe8] sm:$0xff]
    %v843 = vld [vmem:[#allocation4 + $0xf0] sm:$0xff]
    %v844 = vld [vmem:[#allocation4 + $0xf8] sm:$0xff]
    %v845 = vld [vmem:[#allocation4 + $0x100] sm:$0xff]
    %v846 = vld [vmem:[#allocation4 + $0x108] sm:$0xff]
    %v847 = vld [vmem:[#allocation4 + $0x110] sm:$0xff]
    %v848 = vld [vmem:[#allocation4 + $0x118] sm:$0xff]
    %v849 = vld [vmem:[#allocation4 + $0x120] sm:$0xff]
    %v850 = vld [vmem:[#allocation4 + $0x128] sm:$0xff]
    %v851 = vld [vmem:[#allocation4 + $0x130] sm:$0xff]
    %v852 = vld [vmem:[#allocation4 + $0x138] sm:$0xff]
    %v853 = vld [vmem:[#allocation4 + $0x140] sm:$0xff]
    %v854 = vld [vmem:[#allocation4 + $0x148] sm:$0xff]
    %v855 = vld [vmem:[#allocation4 + $0x150] sm:$0xff]
    %v856 = vld [vmem:[#allocation4 + $0x158] sm:$0xff]
    %v857 = vld [vmem:[#allocation4 + $0x160] sm:$0xff]
    %v858 = vld [vmem:[#allocation4 + $0x168] sm:$0xff]
    %v859 = vld [vmem:[#allocation4 + $0x170] sm:$0xff]
    %v860 = vld [vmem:[#allocation4 + $0x178] sm:$0xff]
    %v861 = vld [vmem:[#allocation4 + $0x180] sm:$0xff]
    %v862 = vld [vmem:[#allocation4 + $0x188] sm:$0xff]
    %v863 = vld [vmem:[#allocation4 + $0x190] sm:$0xff]
    %v864 = vld [vmem:[#allocation4 + $0x198] sm:$0xff]
    %v865 = vld [vmem:[#allocation4 + $0x1a0] sm:$0xff]
    %v866 = vld [vmem:[#allocation4 + $0x1a8] sm:$0xff]
    %vm867 = vcmask 588800
    %v869 = vsel %vm867, %v812, 0
    %871 = vmatprep.subr.mxu0 %v814
    %872 = vmatpush1.msra.mxu0 %v813
    %873 = vmatprep.subr.mxu0 %v820
    %874 = vmatpush1.msra.mxu0 %v819
    %875 = vmatprep.subr.mxu0 %v826
    %876 = vmatpush1.msra.mxu0 %v825
    %877 = vmatprep.subr.mxu0 %v832
    %878 = vmatpush1.msra.mxu0 %v831
    %879 = vmatprep.subr.mxu0 %v838
    %880 = vmatpush1.msra.mxu0 %v837
    %881 = vmatprep.subr.mxu0 %v844
    %882 = vmatpush1.msra.mxu0 %v843
    %883 = vmatprep.subr.mxu0 %v850
    %884 = vmatpush1.msra.mxu0 %v849
    %885 = vmatprep.subr.mxu0 %v856
    %886 = vmatpush1.msra.mxu0 %v855
    %887 = vmatprep.subr.mxu0 %v862
    %888 = vmatpush1.msra.mxu0 %v861
    %889 = vmatprep.subr.mxu0 0.0
    %890 = vmatpush1.msra.mxu0 0.0
    %891 = vmatprep.subr.mxu0 0.0
    %892 = vmatpush1.msra.mxu0 0.0
    %893 = vmatprep.subr.mxu0 0.0
    %894 = vmatpush1.msra.mxu0 0.0
    %895 = vmatprep.subr.mxu0 0.0
    %896 = vmatpush1.msra.mxu0 0.0
    %897 = vmatprep.subr.mxu0 0.0
    %898 = vmatpush1.msra.mxu0 0.0
    %899 = vmatprep.subr.mxu0 0.0
    %900 = vmatpush1.msra.mxu0 0.0
    %901 = vmatprep.subr.mxu0 0.0
    %902 = vmatpush1.msra.mxu0 0.0
    %903 = vmatprep.subr.mxu0 0.0
    %904 = vmatpush1.msra.mxu0 0.0
    %905 = vmatprep.subr.mxu0 0.0
    %906 = vmatpush1.msra.mxu0 0.0
    %907 = vmatprep.subr.mxu0 0.0
    %908 = vmatpush1.msra.mxu0 0.0
    %909 = vmatprep.subr.mxu0 0.0
    %910 = vmatpush1.msra.mxu0 0.0
    %911 = vmatprep.subr.mxu0 0.0
    %912 = vmatpush1.msra.mxu0 0.0
    %913 = vmatprep.subr.mxu0 0.0
    %914 = vmatpush1.msra.mxu0 0.0
    %915 = vmatprep.subr.mxu0 0.0
    %916 = vmatpush1.msra.mxu0 0.0
    %917 = vmatprep.subr.mxu0 0.0
    %918 = vmatpush1.msra.mxu0 0.0
    %919 = vmatprep.subr.mxu0 0.0
    %920 = vmatpush1.msra.mxu0 0.0
    %921 = vmatprep.subr.mxu0 0.0
    %922 = vmatpush1.msra.mxu0 0.0
    %923 = vmatprep.subr.mxu0 0.0
    %924 = vmatpush1.msra.mxu0 0.0
    %925 = vmatprep.subr.mxu0 0.0
    %926 = vmatpush1.msra.mxu0 0.0
    %927 = vmatprep.subr.mxu0 0.0
    %928 = vmatpush1.msra.mxu0 0.0
    %929 = vmatprep.subr.mxu0 0.0
    %930 = vmatpush1.msra.mxu0 0.0
    %931 = vmatprep.subr.mxu0 0.0
    %932 = vmatpush1.msra.mxu0 0.0
    %933 = vmatprep.subr.mxu0 0.0
    %934 = vmatpush1.msra.mxu0 0.0
    %935 = vmatprep.mubr.f32.mxu0 0.0
    %936 = vmatmul.mubr.f32.gmra.mrb[0].mxu0 %v869
    %v937 = vpop.f32.mrb[0].mxu0
    %v938 = vadd.f32 0.0, %v937
    %v939 = vpop.f32.mrb[0].mxu0
    %v940 = vadd.f32 0.0, %v939
    %941 = vdwg.mxu0
    %942 = vmatprep.subr.mxu0 %v816
    %943 = vmatpush1.msra.mxu0 %v815
    %944 = vmatprep.subr.mxu0 %v822
    %945 = vmatpush1.msra.mxu0 %v821
    %946 = vmatprep.subr.mxu0 %v828
    %947 = vmatpush1.msra.mxu0 %v827
    %948 = vmatprep.subr.mxu0 %v834
    %949 = vmatpush1.msra.mxu0 %v833
    %950 = vmatprep.subr.mxu0 %v840
    %951 = vmatpush1.msra.mxu0 %v839
    %952 = vmatprep.subr.mxu0 %v846
    %953 = vmatpush1.msra.mxu0 %v845
    %954 = vmatprep.subr.mxu0 %v852
    %955 = vmatpush1.msra.mxu0 %v851
    %956 = vmatprep.subr.mxu0 %v858
    %957 = vmatpush1.msra.mxu0 %v857
    %958 = vmatprep.subr.mxu0 %v864
    %959 = vmatpush1.msra.mxu0 %v863
    %960 = vmatprep.subr.mxu0 0.0
    %961 = vmatpush1.msra.mxu0 0.0
    %962 = vmatprep.subr.mxu0 0.0
    %963 = vmatpush1.msra.mxu0 0.0
    %964 = vmatprep.subr.mxu0 0.0
    %965 = vmatpush1.msra.mxu0 0.0
    %966 = vmatprep.subr.mxu0 0.0
    %967 = vmatpush1.msra.mxu0 0.0
    %968 = vmatprep.subr.mxu0 0.0
    %969 = vmatpush1.msra.mxu0 0.0
    %970 = vmatprep.subr.mxu0 0.0
    %971 = vmatpush1.msra.mxu0 0.0
    %972 = vmatprep.subr.mxu0 0.0
    %973 = vmatpush1.msra.mxu0 0.0
    %974 = vmatprep.subr.mxu0 0.0
    %975 = vmatpush1.msra.mxu0 0.0
    %976 = vmatprep.subr.mxu0 0.0
    %977 = vmatpush1.msra.mxu0 0.0
    %978 = vmatprep.subr.mxu0 0.0
    %979 = vmatpush1.msra.mxu0 0.0
    %980 = vmatprep.subr.mxu0 0.0
    %981 = vmatpush1.msra.mxu0 0.0
    %982 = vmatprep.subr.mxu0 0.0
    %983 = vmatpush1.msra.mxu0 0.0
    %984 = vmatprep.subr.mxu0 0.0
    %985 = vmatpush1.msra.mxu0 0.0
    %986 = vmatprep.subr.mxu0 0.0
    %987 = vmatpush1.msra.mxu0 0.0
    %988 = vmatprep.subr.mxu0 0.0
    %989 = vmatpush1.msra.mxu0 0.0
    %990 = vmatprep.subr.mxu0 0.0
    %991 = vmatpush1.msra.mxu0 0.0
    %992 = vmatprep.subr.mxu0 0.0
    %993 = vmatpush1.msra.mxu0 0.0
    %994 = vmatprep.subr.mxu0 0.0
    %995 = vmatpush1.msra.mxu0 0.0
    %996 = vmatprep.subr.mxu0 0.0
    %997 = vmatpush1.msra.mxu0 0.0
    %998 = vmatprep.subr.mxu0 0.0
    %999 = vmatpush1.msra.mxu0 0.0
    %1000 = vmatprep.subr.mxu0 0.0
    %1001 = vmatpush1.msra.mxu0 0.0
    %1002 = vmatprep.subr.mxu0 0.0
    %1003 = vmatpush1.msra.mxu0 0.0
    %1004 = vmatprep.subr.mxu0 0.0
    %1005 = vmatpush1.msra.mxu0 0.0
    %1006 = vmatprep.mubr.f32.mxu0 0.0
    %1007 = vmatmul.mubr.f32.gmra.mrb[0].mxu0 %v869
    %v1008 = vpop.f32.mrb[0].mxu0
    %v1009 = vadd.f32 0.0, %v1008
    %v1010 = vpop.f32.mrb[0].mxu0
    %v1011 = vadd.f32 0.0, %v1010
    %1012 = vdwg.mxu0
    %1013 = vmatprep.subr.mxu0 %v818
    %1014 = vmatpush1.msra.mxu0 %v817
    %1015 = vmatprep.subr.mxu0 %v824
    %1016 = vmatpush1.msra.mxu0 %v823
    %1017 = vmatprep.subr.mxu0 %v830
    %1018 = vmatpush1.msra.mxu0 %v829
    %1019 = vmatprep.subr.mxu0 %v836
    %1020 = vmatpush1.msra.mxu0 %v835
    %1021 = vmatprep.subr.mxu0 %v842
    %1022 = vmatpush1.msra.mxu0 %v841
    %1023 = vmatprep.subr.mxu0 %v848
    %1024 = vmatpush1.msra.mxu0 %v847
    %1025 = vmatprep.subr.mxu0 %v854
    %1026 = vmatpush1.msra.mxu0 %v853
    %1027 = vmatprep.subr.mxu0 %v860
    %1028 = vmatpush1.msra.mxu0 %v859
    %1029 = vmatprep.subr.mxu0 %v866
    %1030 = vmatpush1.msra.mxu0 %v865
    %1031 = vmatprep.subr.mxu0 0.0
    %1032 = vmatpush1.msra.mxu0 0.0
    %1033 = vmatprep.subr.mxu0 0.0
    %1034 = vmatpush1.msra.mxu0 0.0
    %1035 = vmatprep.subr.mxu0 0.0
    %1036 = vmatpush1.msra.mxu0 0.0
    %1037 = vmatprep.subr.mxu0 0.0
    %1038 = vmatpush1.msra.mxu0 0.0
    %1039 = vmatprep.subr.mxu0 0.0
    %1040 = vmatpush1.msra.mxu0 0.0
    %1041 = vmatprep.subr.mxu0 0.0
    %1042 = vmatpush1.msra.mxu0 0.0
    %1043 = vmatprep.subr.mxu0 0.0
    %1044 = vmatpush1.msra.mxu0 0.0
    %1045 = vmatprep.subr.mxu0 0.0
    %1046 = vmatpush1.msra.mxu0 0.0
    %1047 = vmatprep.subr.mxu0 0.0
    %1048 = vmatpush1.msra.mxu0 0.0
    %1049 = vmatprep.subr.mxu0 0.0
    %1050 = vmatpush1.msra.mxu0 0.0
    %1051 = vmatprep.subr.mxu0 0.0
    %1052 = vmatpush1.msra.mxu0 0.0
    %1053 = vmatprep.subr.mxu0 0.0
    %1054 = vmatpush1.msra.mxu0 0.0
    %1055 = vmatprep.subr.mxu0 0.0
    %1056 = vmatpush1.msra.mxu0 0.0
    %1057 = vmatprep.subr.mxu0 0.0
    %1058 = vmatpush1.msra.mxu0 0.0
    %1059 = vmatprep.subr.mxu0 0.0
    %1060 = vmatpush1.msra.mxu0 0.0
    %1061 = vmatprep.subr.mxu0 0.0
    %1062 = vmatpush1.msra.mxu0 0.0
    %1063 = vmatprep.subr.mxu0 0.0
    %1064 = vmatpush1.msra.mxu0 0.0
    %1065 = vmatprep.subr.mxu0 0.0
    %1066 = vmatpush1.msra.mxu0 0.0
    %1067 = vmatprep.subr.mxu0 0.0
    %1068 = vmatpush1.msra.mxu0 0.0
    %1069 = vmatprep.subr.mxu0 0.0
    %1070 = vmatpush1.msra.mxu0 0.0
    %1071 = vmatprep.subr.mxu0 0.0
    %1072 = vmatpush1.msra.mxu0 0.0
    %1073 = vmatprep.subr.mxu0 0.0
    %1074 = vmatpush1.msra.mxu0 0.0
    %1075 = vmatprep.subr.mxu0 0.0
    %1076 = vmatpush1.msra.mxu0 0.0
    %1077 = vmatprep.mubr.f32.mxu0 0.0
    %1078 = vmatmul.mubr.f32.gmra.mrb[0].mxu0 %v869
    %v1079 = vpop.f32.mrb[0].mxu0
    %v1080 = vadd.f32 0.0, %v1079
    %v1081 = vpop.f32.mrb[0].mxu0
    %v1082 = vadd.f32 0.0, %v1081
    %1083 = vdwg.mxu0
    %v1084 = vld [vmem:[%s6] sm:$0xf]
    %1086 = vset.pattern.permute.xlu0 0
    %1087 = vperm.xlu0 %1086, %v1084
    %v1088 = vpop.permute.xlu0 %1087
    %v1090 = vmul.f32 %v938, %v1088
    %v1091 = vmul.f32 %v940, %v1088
    %v1092 = vmul.f32 %v1009, %v1088
    %v1093 = vmul.f32 %v1011, %v1088
    %v1094 = vmul.f32 %v1080, %v1088
    %v1095 = vmul.f32 %v1082, %v1088
    %v1096 = vld [vmem:[%s7] sm:$0xf]
    %1098 = vset.pattern.permute.xlu0 0
    %1099 = vperm.xlu0 %1098, %v1096
    %v1100 = vpop.permute.xlu0 %1099
    %v1102 = vadd.f32 %v1090, %v1100
    %v1103 = vadd.f32 %v1091, %v1100
    %v1104 = vadd.f32 %v1092, %v1100
    %v1105 = vadd.f32 %v1093, %v1100
    %v1106 = vadd.f32 %v1094, %v1100
    %v1107 = vadd.f32 %v1095, %v1100
    %v1108 = vmax.f32 %v1102, 0.0
    %v1109 = vmax.f32 %v1103, 0.0
    %v1110 = vmax.f32 %v1104, 0.0
    %v1111 = vmax.f32 %v1105, 0.0
    %v1112 = vmax.f32 %v1106, 0.0
    %v1113 = vmax.f32 %v1107, 0.0
    %v1114 = vld [vmem:[%s11] sm:$0x3f]
    %v1116 = vlaneseq
    %v1117 = vshrl.u32 %v1116, 7
    %v1118 = vsub.s32 0, %v1117
    %v1119 = vrot.slane %v1114, %v1118
    %v1120 = vlaneseq
    %v1121 = vshrl.u32 %v1120, 7
    %v1122 = vsub.s32 1, %v1121
    %v1123 = vrot.slane %v1114, %v1122
    %v1124 = vlaneseq
    %v1125 = vshrl.u32 %v1124, 7
    %v1126 = vsub.s32 2, %v1125
    %v1127 = vrot.slane %v1114, %v1126
    %v1128 = vlaneseq
    %v1129 = vshrl.u32 %v1128, 7
    %v1130 = vsub.s32 3, %v1129
    %v1131 = vrot.slane %v1114, %v1130
    %v1132 = vlaneseq
    %v1133 = vshrl.u32 %v1132, 7
    %v1134 = vsub.s32 4, %v1133
    %v1135 = vrot.slane %v1114, %v1134
    %v1136 = vlaneseq
    %v1137 = vshrl.u32 %v1136, 7
    %v1138 = vsub.s32 5, %v1137
    %v1139 = vrot.slane %v1114, %v1138
    %v1146 = vmul.f32 %v1108, %v1119
    %v1147 = vmul.f32 %v1109, %v1123
    %v1148 = vmul.f32 %v1110, %v1127
    %v1149 = vmul.f32 %v1111, %v1131
    %v1150 = vmul.f32 %v1112, %v1135
    %v1151 = vmul.f32 %v1113, %v1139
    %v1158 = vcombine.low %v1146, %v1147
    %v1159 = vcombine.low %v1148, %v1149
    %v1160 = vcombine.low %v1150, %v1151
    %1164 = vst [vmem:[#allocation5 + $0x4] sm:$0xff] %v1158
    %1165 = vst [vmem:[#allocation5 + $0xc] sm:$0xff] %v1159
    %vm1166 = vcmask 1043456
    %vm1167 = vmor %vm49, %vm1166
    %1168 = vst.msk [vmem:[#allocation5 + $0x14] sm:$0xff] %vm1167, %v1160
    %v1169 = vld [vmem:[#allocation5] sm:$0xff]
    %v1170 = vld [vmem:[#allocation5 + $0x8] sm:$0xff]
    %v1171 = vld [vmem:[#allocation5 + $0x10] sm:$0xff]
    %v1175 = vcombine.high %v1169, %v1169
    %v1176 = vcombine.high %v1170, %v1170
    %v1177 = vcombine.high %v1171, %v1171
    %1178 = vrot.lane.b32.xlu0 %v1169, 19
    %v1179 = vpop.permute.xlu0 %1178
    %1180 = vrot.lane.b32.xlu0 %v1175, 19
    %v1181 = vpop.permute.xlu0 %1180
    %1182 = vrot.lane.b32.xlu0 %v1170, 19
    %v1183 = vpop.permute.xlu0 %1182
    %1184 = vrot.lane.b32.xlu0 %v1176, 19
    %v1185 = vpop.permute.xlu0 %1184
    %1186 = vrot.lane.b32.xlu0 %v1171, 19
    %v1187 = vpop.permute.xlu0 %1186
    %1188 = vrot.lane.b32.xlu0 %v1177, 19
    %v1189 = vpop.permute.xlu0 %1188
    %v1190 = vsel %vm483, %v1179, %v1181
    %v1191 = vsel %vm483, %v1181, %v1183
    %v1192 = vsel %vm483, %v1183, %v1185
    %v1193 = vsel %vm483, %v1185, %v1187
    %v1194 = vsel %vm483, %v1187, %v1189
    %1201 = vst [vmem:[#allocation6] sm:$0xf] %v1190
    %1202 = vst [vmem:[#allocation6 + $0x8] sm:$0xf] %v1191
    %1203 = vst [vmem:[#allocation6 + $0x10] sm:$0xf] %v1192
    %1204 = vst [vmem:[#allocation6 + $0x18] sm:$0xf] %v1193
    %1205 = vst [vmem:[#allocation6 + $0x20] sm:$0xf] %v1194
    %1206 = vst.msk [vmem:[#allocation6 + $0x28] sm:$0xf] %vm426, %v1189
    %v1207 = vld [vmem:[#allocation5] sm:$0xff]
    %v1208 = vld [vmem:[#allocation5 + $0x8] sm:$0xff]
    %v1209 = vld [vmem:[#allocation5 + $0x10] sm:$0xff]
    %v1213 = vcombine.low %v1207, %v1207
    %v1214 = vcombine.low %v1208, %v1208
    %v1215 = vcombine.low %v1209, %v1209
    %1216 = vrot.lane.b32.xlu0 %v1213, 18
    %v1217 = vpop.permute.xlu0 %1216
    %1218 = vrot.lane.b32.xlu0 %v1207, 18
    %v1219 = vpop.permute.xlu0 %1218
    %1220 = vrot.lane.b32.xlu0 %v1214, 18
    %v1221 = vpop.permute.xlu0 %1220
    %1222 = vrot.lane.b32.xlu0 %v1208, 18
    %v1223 = vpop.permute.xlu0 %1222
    %1224 = vrot.lane.b32.xlu0 %v1215, 18
    %v1225 = vpop.permute.xlu0 %1224
    %1226 = vrot.lane.b32.xlu0 %v1209, 18
    %v1227 = vpop.permute.xlu0 %1226
    %v1228 = vsel %vm525, %v1217, %v1219
    %v1229 = vsel %vm525, %v1219, %v1221
    %v1230 = vsel %vm525, %v1221, %v1223
    %v1231 = vsel %vm525, %v1223, %v1225
    %v1232 = vsel %vm525, %v1225, %v1227
    %1239 = vst [vmem:[#allocation6] sm:$0xf0] %v1228
    %1240 = vst [vmem:[#allocation6 + $0x8] sm:$0xf0] %v1229
    %1241 = vst [vmem:[#allocation6 + $0x10] sm:$0xf0] %v1230
    %1242 = vst [vmem:[#allocation6 + $0x18] sm:$0xf0] %v1231
    %1243 = vst [vmem:[#allocation6 + $0x20] sm:$0xf0] %v1232
    %1244 = vst.msk [vmem:[#allocation6 + $0x28] sm:$0xf0] %vm49, %v1227
    %v1245 = vld [vmem:[#allocation5] sm:$0xff]
    %v1246 = vld [vmem:[#allocation5 + $0x8] sm:$0xff]
    %v1247 = vld [vmem:[#allocation5 + $0x10] sm:$0xff]
    %v1251 = vcombine.high %v1245, %v1245
    %v1252 = vcombine.high %v1246, %v1246
    %v1253 = vcombine.high %v1247, %v1247
    %1254 = vrot.lane.b32.xlu0 %v1245, 17
    %v1255 = vpop.permute.xlu0 %1254
    %1256 = vrot.lane.b32.xlu0 %v1251, 17
    %v1257 = vpop.permute.xlu0 %1256
    %1258 = vrot.lane.b32.xlu0 %v1246, 17
    %v1259 = vpop.permute.xlu0 %1258
    %1260 = vrot.lane.b32.xlu0 %v1252, 17
    %v1261 = vpop.permute.xlu0 %1260
    %1262 = vrot.lane.b32.xlu0 %v1247, 17
    %v1263 = vpop.permute.xlu0 %1262
    %1264 = vrot.lane.b32.xlu0 %v1253, 17
    %v1265 = vpop.permute.xlu0 %1264
    %v1266 = vsel %vm567, %v1255, %v1257
    %v1267 = vsel %vm567, %v1257, %v1259
    %v1268 = vsel %vm567, %v1259, %v1261
    %v1269 = vsel %vm567, %v1261, %v1263
    %v1270 = vsel %vm567, %v1263, %v1265
    %1277 = vst [vmem:[#allocation6 + $0x30] sm:$0xf] %v1266
    %1278 = vst [vmem:[#allocation6 + $0x38] sm:$0xf] %v1267
    %1279 = vst [vmem:[#allocation6 + $0x40] sm:$0xf] %v1268
    %1280 = vst [vmem:[#allocation6 + $0x48] sm:$0xf] %v1269
    %1281 = vst [vmem:[#allocation6 + $0x50] sm:$0xf] %v1270
    %1282 = vst.msk [vmem:[#allocation6 + $0x58] sm:$0xf] %vm426, %v1265
    %v1283 = vld [vmem:[#allocation5] sm:$0xff]
    %v1284 = vld [vmem:[#allocation5 + $0x8] sm:$0xff]
    %v1285 = vld [vmem:[#allocation5 + $0x10] sm:$0xff]
    %v1286 = vld [vmem:[#allocation5 + $0x18] sm:$0xf]
    %v1291 = vcombine.low %v1283, %v1283
    %v1292 = vcombine.low %v1284, %v1284
    %v1293 = vcombine.low %v1285, %v1285
    %v1294 = vcombine.low %v1286, %v1286
    %1295 = vrot.lane.b32.xlu0 %v1291, 1
    %v1296 = vpop.permute.xlu0 %1295
    %1297 = vrot.lane.b32.xlu0 %v1283, 1
    %v1298 = vpop.permute.xlu0 %1297
    %1299 = vrot.lane.b32.xlu0 %v1292, 1
    %v1300 = vpop.permute.xlu0 %1299
    %1301 = vrot.lane.b32.xlu0 %v1284, 1
    %v1302 = vpop.permute.xlu0 %1301
    %1303 = vrot.lane.b32.xlu0 %v1293, 1
    %v1304 = vpop.permute.xlu0 %1303
    %1305 = vrot.lane.b32.xlu0 %v1285, 1
    %v1306 = vpop.permute.xlu0 %1305
    %1307 = vrot.lane.b32.xlu0 %v1294, 1
    %v1308 = vpop.permute.xlu0 %1307
    %v1309 = vsel %vm613, %v1296, %v1298
    %v1310 = vsel %vm613, %v1298, %v1300
    %v1311 = vsel %vm613, %v1300, %v1302
    %v1312 = vsel %vm613, %v1302, %v1304
    %v1313 = vsel %vm613, %v1304, %v1306
    %v1314 = vsel %vm613, %v1306, %v1308
    %1321 = vst [vmem:[#allocation6 + $0x30] sm:$0xf0] %v1309
    %1322 = vst [vmem:[#allocation6 + $0x38] sm:$0xf0] %v1310
    %1323 = vst [vmem:[#allocation6 + $0x40] sm:$0xf0] %v1311
    %1324 = vst [vmem:[#allocation6 + $0x48] sm:$0xf0] %v1312
    %1325 = vst [vmem:[#allocation6 + $0x50] sm:$0xf0] %v1313
    %1326 = vst.msk [vmem:[#allocation6 + $0x58] sm:$0xf0] %vm49, %v1314
    %v1327 = vld [vmem:[#allocation5 + $0x4] sm:$0xff]
    %v1328 = vld [vmem:[#allocation5 + $0xc] sm:$0xff]
    %v1329 = vld [vmem:[#allocation5 + $0x14] sm:$0xff]
    %v1333 = vcombine.high %v1327, %v1327
    %v1334 = vcombine.high %v1328, %v1328
    %v1335 = vcombine.high %v1329, %v1329
    %1339 = vst [vmem:[#allocation6 + $0x60] sm:$0xf] %v1327
    %1340 = vst [vmem:[#allocation6 + $0x68] sm:$0xf] %v1333
    %1341 = vst [vmem:[#allocation6 + $0x70] sm:$0xf] %v1328
    %1342 = vst [vmem:[#allocation6 + $0x78] sm:$0xf] %v1334
    %1343 = vst [vmem:[#allocation6 + $0x80] sm:$0xf] %v1329
    %1344 = vst.msk [vmem:[#allocation6 + $0x88] sm:$0xf] %vm426, %v1335
    %v1345 = vld [vmem:[#allocation5 + $0x4] sm:$0xff]
    %v1346 = vld [vmem:[#allocation5 + $0xc] sm:$0xff]
    %v1347 = vld [vmem:[#allocation5 + $0x14] sm:$0xff]
    %v1351 = vcombine.low %v1345, %v1345
    %v1352 = vcombine.low %v1346, %v1346
    %v1353 = vcombine.low %v1347, %v1347
    %1354 = vrot.lane.b32.xlu0 %v1351, 127
    %v1355 = vpop.permute.xlu0 %1354
    %1356 = vrot.lane.b32.xlu0 %v1345, 127
    %v1357 = vpop.permute.xlu0 %1356
    %1358 = vrot.lane.b32.xlu0 %v1352, 127
    %v1359 = vpop.permute.xlu0 %1358
    %1360 = vrot.lane.b32.xlu0 %v1346, 127
    %v1361 = vpop.permute.xlu0 %1360
    %1362 = vrot.lane.b32.xlu0 %v1353, 127
    %v1363 = vpop.permute.xlu0 %1362
    %1364 = vrot.lane.b32.xlu0 %v1347, 127
    %v1365 = vpop.permute.xlu0 %1364
    %v1366 = vsel %vm668, %v1355, %v1357
    %v1367 = vsel %vm668, %v1357, %v1359
    %v1368 = vsel %vm668, %v1359, %v1361
    %v1369 = vsel %vm668, %v1361, %v1363
    %v1370 = vsel %vm668, %v1363, %v1365
    %1377 = vst [vmem:[#allocation6 + $0x60] sm:$0xf0] %v1366
    %1378 = vst [vmem:[#allocation6 + $0x68] sm:$0xf0] %v1367
    %1379 = vst [vmem:[#allocation6 + $0x70] sm:$0xf0] %v1368
    %1380 = vst [vmem:[#allocation6 + $0x78] sm:$0xf0] %v1369
    %1381 = vst [vmem:[#allocation6 + $0x80] sm:$0xf0] %v1370
    %1382 = vst.msk [vmem:[#allocation6 + $0x88] sm:$0xf0] %vm49, %v1365
    %v1383 = vld [vmem:[#allocation5 + $0x4] sm:$0xff]
    %v1384 = vld [vmem:[#allocation5 + $0xc] sm:$0xff]
    %v1385 = vld [vmem:[#allocation5 + $0x14] sm:$0xff]
    %v1389 = vcombine.high %v1383, %v1383
    %v1390 = vcombine.high %v1384, %v1384
    %v1391 = vcombine.high %v1385, %v1385
    %1392 = vrot.lane.b32.xlu0 %v1383, 111
    %v1393 = vpop.permute.xlu0 %1392
    %1394 = vrot.lane.b32.xlu0 %v1389, 111
    %v1395 = vpop.permute.xlu0 %1394
    %1396 = vrot.lane.b32.xlu0 %v1384, 111
    %v1397 = vpop.permute.xlu0 %1396
    %1398 = vrot.lane.b32.xlu0 %v1390, 111
    %v1399 = vpop.permute.xlu0 %1398
    %1400 = vrot.lane.b32.xlu0 %v1385, 111
    %v1401 = vpop.permute.xlu0 %1400
    %1402 = vrot.lane.b32.xlu0 %v1391, 111
    %v1403 = vpop.permute.xlu0 %1402
    %v1404 = vsel %vm710, %v1393, %v1395
    %v1405 = vsel %vm710, %v1395, %v1397
    %v1406 = vsel %vm710, %v1397, %v1399
    %v1407 = vsel %vm710, %v1399, %v1401
    %v1408 = vsel %vm710, %v1401, %v1403
    %1415 = vst [vmem:[#allocation6 + $0x90] sm:$0xf] %v1404
    %1416 = vst [vmem:[#allocation6 + $0x98] sm:$0xf] %v1405
    %1417 = vst [vmem:[#allocation6 + $0xa0] sm:$0xf] %v1406
    %1418 = vst [vmem:[#allocation6 + $0xa8] sm:$0xf] %v1407
    %1419 = vst [vmem:[#allocation6 + $0xb0] sm:$0xf] %v1408
    %1420 = vst.msk [vmem:[#allocation6 + $0xb8] sm:$0xf] %vm426, %v1403
    %v1421 = vld [vmem:[#allocation5 + $0x4] sm:$0xff]
    %v1422 = vld [vmem:[#allocation5 + $0xc] sm:$0xff]
    %v1423 = vld [vmem:[#allocation5 + $0x14] sm:$0xff]
    %v1427 = vcombine.low %v1421, %v1421
    %v1428 = vcombine.low %v1422, %v1422
    %v1429 = vcombine.low %v1423, %v1423
    %1430 = vrot.lane.b32.xlu0 %v1427, 110
    %v1431 = vpop.permute.xlu0 %1430
    %1432 = vrot.lane.b32.xlu0 %v1421, 110
    %v1433 = vpop.permute.xlu0 %1432
    %1434 = vrot.lane.b32.xlu0 %v1428, 110
    %v1435 = vpop.permute.xlu0 %1434
    %1436 = vrot.lane.b32.xlu0 %v1422, 110
    %v1437 = vpop.permute.xlu0 %1436
    %1438 = vrot.lane.b32.xlu0 %v1429, 110
    %v1439 = vpop.permute.xlu0 %1438
    %1440 = vrot.lane.b32.xlu0 %v1423, 110
    %v1441 = vpop.permute.xlu0 %1440
    %v1442 = vsel %vm752, %v1431, %v1433
    %v1443 = vsel %vm752, %v1433, %v1435
    %v1444 = vsel %vm752, %v1435, %v1437
    %v1445 = vsel %vm752, %v1437, %v1439
    %v1446 = vsel %vm752, %v1439, %v1441
    %1453 = vst [vmem:[#allocation6 + $0x90] sm:$0xf0] %v1442
    %1454 = vst [vmem:[#allocation6 + $0x98] sm:$0xf0] %v1443
    %1455 = vst [vmem:[#allocation6 + $0xa0] sm:$0xf0] %v1444
    %1456 = vst [vmem:[#allocation6 + $0xa8] sm:$0xf0] %v1445
    %1457 = vst [vmem:[#allocation6 + $0xb0] sm:$0xf0] %v1446
    %1458 = vst.msk [vmem:[#allocation6 + $0xb8] sm:$0xf0] %vm49, %v1441
    %v1459 = vld [vmem:[#allocation5 + $0x4] sm:$0xff]
    %v1460 = vld [vmem:[#allocation5 + $0xc] sm:$0xff]
    %v1461 = vld [vmem:[#allocation5 + $0x14] sm:$0xff]
    %v1465 = vcombine.high %v1459, %v1459
    %v1466 = vcombine.high %v1460, %v1460
    %v1467 = vcombine.high %v1461, %v1461
    %1468 = vrot.lane.b32.xlu0 %v1459, 109
    %v1469 = vpop.permute.xlu0 %1468
    %1470 = vrot.lane.b32.xlu0 %v1465, 109
    %v1471 = vpop.permute.xlu0 %1470
    %1472 = vrot.lane.b32.xlu0 %v1460, 109
    %v1473 = vpop.permute.xlu0 %1472
    %1474 = vrot.lane.b32.xlu0 %v1466, 109
    %v1475 = vpop.permute.xlu0 %1474
    %1476 = vrot.lane.b32.xlu0 %v1461, 109
    %v1477 = vpop.permute.xlu0 %1476
    %1478 = vrot.lane.b32.xlu0 %v1467, 109
    %v1479 = vpop.permute.xlu0 %1478
    %v1480 = vsel %vm794, %v1469, %v1471
    %v1481 = vsel %vm794, %v1471, %v1473
    %v1482 = vsel %vm794, %v1473, %v1475
    %v1483 = vsel %vm794, %v1475, %v1477
    %v1484 = vsel %vm794, %v1477, %v1479
    %1491 = vst [vmem:[#allocation6 + $0xc0] sm:$0xf] %v1480
    %1492 = vst [vmem:[#allocation6 + $0xc8] sm:$0xf] %v1481
    %1493 = vst [vmem:[#allocation6 + $0xd0] sm:$0xf] %v1482
    %1494 = vst [vmem:[#allocation6 + $0xd8] sm:$0xf] %v1483
    %1495 = vst [vmem:[#allocation6 + $0xe0] sm:$0xf] %v1484
    %1496 = vst.msk [vmem:[#allocation6 + $0xe8] sm:$0xf] %vm426, %v1479
    %v1497 = vld [vmem:[%s8] sm:$0xf]
    %v1498 = vld [vmem:[#allocation6] sm:$0xff]
    %v1499 = vld [vmem:[#allocation6 + $0x8] sm:$0xff]
    %v1500 = vld [vmem:[#allocation6 + $0x10] sm:$0xff]
    %v1501 = vld [vmem:[#allocation6 + $0x18] sm:$0xff]
    %v1502 = vld [vmem:[#allocation6 + $0x20] sm:$0xff]
    %v1503 = vld [vmem:[#allocation6 + $0x28] sm:$0xff]
    %v1504 = vld [vmem:[#allocation6 + $0x30] sm:$0xff]
    %v1505 = vld [vmem:[#allocation6 + $0x38] sm:$0xff]
    %v1506 = vld [vmem:[#allocation6 + $0x40] sm:$0xff]
    %v1507 = vld [vmem:[#allocation6 + $0x48] sm:$0xff]
    %v1508 = vld [vmem:[#allocation6 + $0x50] sm:$0xff]
    %v1509 = vld [vmem:[#allocation6 + $0x58] sm:$0xff]
    %v1510 = vld [vmem:[#allocation6 + $0x60] sm:$0xff]
    %v1511 = vld [vmem:[#allocation6 + $0x68] sm:$0xff]
    %v1512 = vld [vmem:[#allocation6 + $0x70] sm:$0xff]
    %v1513 = vld [vmem:[#allocation6 + $0x78] sm:$0xff]
    %v1514 = vld [vmem:[#allocation6 + $0x80] sm:$0xff]
    %v1515 = vld [vmem:[#allocation6 + $0x88] sm:$0xff]
    %v1516 = vld [vmem:[#allocation6 + $0x90] sm:$0xff]
    %v1517 = vld [vmem:[#allocation6 + $0x98] sm:$0xff]
    %v1518 = vld [vmem:[#allocation6 + $0xa0] sm:$0xff]
    %v1519 = vld [vmem:[#allocation6 + $0xa8] sm:$0xff]
    %v1520 = vld [vmem:[#allocation6 + $0xb0] sm:$0xff]
    %v1521 = vld [vmem:[#allocation6 + $0xb8] sm:$0xff]
    %v1522 = vld [vmem:[#allocation6 + $0xc0] sm:$0xf]
    %v1523 = vld [vmem:[#allocation6 + $0xc8] sm:$0xf]
    %v1524 = vld [vmem:[#allocation6 + $0xd0] sm:$0xf]
    %v1525 = vld [vmem:[#allocation6 + $0xd8] sm:$0xf]
    %v1526 = vld [vmem:[#allocation6 + $0xe0] sm:$0xf]
    %v1527 = vld [vmem:[#allocation6 + $0xe8] sm:$0xf]
    %vm1528 = vcmask 293888
    %v1530 = vsel %vm1528, %v1497, 0
    %v1533 = vsel %vm1166, %v1522, 0
    %v1536 = vsel %vm1166, %v1523, 0
    %v1539 = vsel %vm1166, %v1524, 0
    %v1542 = vsel %vm1166, %v1525, 0
    %v1545 = vsel %vm1166, %v1526, 0
    %v1548 = vsel %vm1166, %v1527, 0
    %1550 = vmatprep.subr.mxu0 %v1499
    %1551 = vmatpush1.msra.mxu0 %v1498
    %1552 = vmatprep.subr.mxu0 %v1505
    %1553 = vmatpush1.msra.mxu0 %v1504
    %1554 = vmatprep.subr.mxu0 %v1511
    %1555 = vmatpush1.msra.mxu0 %v1510
    %1556 = vmatprep.subr.mxu0 %v1517
    %1557 = vmatpush1.msra.mxu0 %v1516
    %1558 = vmatprep.subr.mxu0 %v1536
    %1559 = vmatpush1.msra.mxu0 %v1533
    %1560 = vmatprep.subr.mxu0 0.0
    %1561 = vmatpush1.msra.mxu0 0.0
    %1562 = vmatprep.subr.mxu0 0.0
    %1563 = vmatpush1.msra.mxu0 0.0
    %1564 = vmatprep.subr.mxu0 0.0
    %1565 = vmatpush1.msra.mxu0 0.0
    %1566 = vmatprep.subr.mxu0 0.0
    %1567 = vmatpush1.msra.mxu0 0.0
    %1568 = vmatprep.subr.mxu0 0.0
    %1569 = vmatpush1.msra.mxu0 0.0
    %1570 = vmatprep.subr.mxu0 0.0
    %1571 = vmatpush1.msra.mxu0 0.0
    %1572 = vmatprep.subr.mxu0 0.0
    %1573 = vmatpush1.msra.mxu0 0.0
    %1574 = vmatprep.subr.mxu0 0.0
    %1575 = vmatpush1.msra.mxu0 0.0
    %1576 = vmatprep.subr.mxu0 0.0
    %1577 = vmatpush1.msra.mxu0 0.0
    %1578 = vmatprep.subr.mxu0 0.0
    %1579 = vmatpush1.msra.mxu0 0.0
    %1580 = vmatprep.subr.mxu0 0.0
    %1581 = vmatpush1.msra.mxu0 0.0
    %1582 = vmatprep.subr.mxu0 0.0
    %1583 = vmatpush1.msra.mxu0 0.0
    %1584 = vmatprep.subr.mxu0 0.0
    %1585 = vmatpush1.msra.mxu0 0.0
    %1586 = vmatprep.subr.mxu0 0.0
    %1587 = vmatpush1.msra.mxu0 0.0
    %1588 = vmatprep.subr.mxu0 0.0
    %1589 = vmatpush1.msra.mxu0 0.0
    %1590 = vmatprep.subr.mxu0 0.0
    %1591 = vmatpush1.msra.mxu0 0.0
    %1592 = vmatprep.subr.mxu0 0.0
    %1593 = vmatpush1.msra.mxu0 0.0
    %1594 = vmatprep.subr.mxu0 0.0
    %1595 = vmatpush1.msra.mxu0 0.0
    %1596 = vmatprep.subr.mxu0 0.0
    %1597 = vmatpush1.msra.mxu0 0.0
    %1598 = vmatprep.subr.mxu0 0.0
    %1599 = vmatpush1.msra.mxu0 0.0
    %1600 = vmatprep.subr.mxu0 0.0
    %1601 = vmatpush1.msra.mxu0 0.0
    %1602 = vmatprep.subr.mxu0 0.0
    %1603 = vmatpush1.msra.mxu0 0.0
    %1604 = vmatprep.subr.mxu0 0.0
    %1605 = vmatpush1.msra.mxu0 0.0
    %1606 = vmatprep.subr.mxu0 0.0
    %1607 = vmatpush1.msra.mxu0 0.0
    %1608 = vmatprep.subr.mxu0 0.0
    %1609 = vmatpush1.msra.mxu0 0.0
    %1610 = vmatprep.subr.mxu0 0.0
    %1611 = vmatpush1.msra.mxu0 0.0
    %1612 = vmatprep.subr.mxu0 0.0
    %1613 = vmatpush1.msra.mxu0 0.0
    %1614 = vmatprep.mubr.f32.mxu0 0.0
    %1615 = vmatmul.mubr.f32.gmra.mrb[0].mxu0 %v1530
    %v1616 = vpop.f32.mrb[0].mxu0
    %v1617 = vadd.f32 0.0, %v1616
    %v1618 = vpop.f32.mrb[0].mxu0
    %v1619 = vadd.f32 0.0, %v1618
    %1620 = vdwg.mxu0
    %1621 = vmatprep.subr.mxu0 %v1501
    %1622 = vmatpush1.msra.mxu0 %v1500
    %1623 = vmatprep.subr.mxu0 %v1507
    %1624 = vmatpush1.msra.mxu0 %v1506
    %1625 = vmatprep.subr.mxu0 %v1513
    %1626 = vmatpush1.msra.mxu0 %v1512
    %1627 = vmatprep.subr.mxu0 %v1519
    %1628 = vmatpush1.msra.mxu0 %v1518
    %1629 = vmatprep.subr.mxu0 %v1542
    %1630 = vmatpush1.msra.mxu0 %v1539
    %1631 = vmatprep.subr.mxu0 0.0
    %1632 = vmatpush1.msra.mxu0 0.0
    %1633 = vmatprep.subr.mxu0 0.0
    %1634 = vmatpush1.msra.mxu0 0.0
    %1635 = vmatprep.subr.mxu0 0.0
    %1636 = vmatpush1.msra.mxu0 0.0
    %1637 = vmatprep.subr.mxu0 0.0
    %1638 = vmatpush1.msra.mxu0 0.0
    %1639 = vmatprep.subr.mxu0 0.0
    %1640 = vmatpush1.msra.mxu0 0.0
    %1641 = vmatprep.subr.mxu0 0.0
    %1642 = vmatpush1.msra.mxu0 0.0
    %1643 = vmatprep.subr.mxu0 0.0
    %1644 = vmatpush1.msra.mxu0 0.0
    %1645 = vmatprep.subr.mxu0 0.0
    %1646 = vmatpush1.msra.mxu0 0.0
    %1647 = vmatprep.subr.mxu0 0.0
    %1648 = vmatpush1.msra.mxu0 0.0
    %1649 = vmatprep.subr.mxu0 0.0
    %1650 = vmatpush1.msra.mxu0 0.0
    %1651 = vmatprep.subr.mxu0 0.0
    %1652 = vmatpush1.msra.mxu0 0.0
    %1653 = vmatprep.subr.mxu0 0.0
    %1654 = vmatpush1.msra.mxu0 0.0
    %1655 = vmatprep.subr.mxu0 0.0
    %1656 = vmatpush1.msra.mxu0 0.0
    %1657 = vmatprep.subr.mxu0 0.0
    %1658 = vmatpush1.msra.mxu0 0.0
    %1659 = vmatprep.subr.mxu0 0.0
    %1660 = vmatpush1.msra.mxu0 0.0
    %1661 = vmatprep.subr.mxu0 0.0
    %1662 = vmatpush1.msra.mxu0 0.0
    %1663 = vmatprep.subr.mxu0 0.0
    %1664 = vmatpush1.msra.mxu0 0.0
    %1665 = vmatprep.subr.mxu0 0.0
    %1666 = vmatpush1.msra.mxu0 0.0
    %1667 = vmatprep.subr.mxu0 0.0
    %1668 = vmatpush1.msra.mxu0 0.0
    %1669 = vmatprep.subr.mxu0 0.0
    %1670 = vmatpush1.msra.mxu0 0.0
    %1671 = vmatprep.subr.mxu0 0.0
    %1672 = vmatpush1.msra.mxu0 0.0
    %1673 = vmatprep.subr.mxu0 0.0
    %1674 = vmatpush1.msra.mxu0 0.0
    %1675 = vmatprep.subr.mxu0 0.0
    %1676 = vmatpush1.msra.mxu0 0.0
    %1677 = vmatprep.subr.mxu0 0.0
    %1678 = vmatpush1.msra.mxu0 0.0
    %1679 = vmatprep.subr.mxu0 0.0
    %1680 = vmatpush1.msra.mxu0 0.0
    %1681 = vmatprep.subr.mxu0 0.0
    %1682 = vmatpush1.msra.mxu0 0.0
    %1683 = vmatprep.subr.mxu0 0.0
    %1684 = vmatpush1.msra.mxu0 0.0
    %1685 = vmatprep.mubr.f32.mxu0 0.0
    %1686 = vmatmul.mubr.f32.gmra.mrb[0].mxu0 %v1530
    %v1687 = vpop.f32.mrb[0].mxu0
    %v1688 = vadd.f32 0.0, %v1687
    %v1689 = vpop.f32.mrb[0].mxu0
    %v1690 = vadd.f32 0.0, %v1689
    %1691 = vdwg.mxu0
    %1692 = vmatprep.subr.mxu0 %v1503
    %1693 = vmatpush1.msra.mxu0 %v1502
    %1694 = vmatprep.subr.mxu0 %v1509
    %1695 = vmatpush1.msra.mxu0 %v1508
    %1696 = vmatprep.subr.mxu0 %v1515
    %1697 = vmatpush1.msra.mxu0 %v1514
    %1698 = vmatprep.subr.mxu0 %v1521
    %1699 = vmatpush1.msra.mxu0 %v1520
    %1700 = vmatprep.subr.mxu0 %v1548
    %1701 = vmatpush1.msra.mxu0 %v1545
    %1702 = vmatprep.subr.mxu0 0.0
    %1703 = vmatpush1.msra.mxu0 0.0
    %1704 = vmatprep.subr.mxu0 0.0
    %1705 = vmatpush1.msra.mxu0 0.0
    %1706 = vmatprep.subr.mxu0 0.0
    %1707 = vmatpush1.msra.mxu0 0.0
    %1708 = vmatprep.subr.mxu0 0.0
    %1709 = vmatpush1.msra.mxu0 0.0
    %1710 = vmatprep.subr.mxu0 0.0
    %1711 = vmatpush1.msra.mxu0 0.0
    %1712 = vmatprep.subr.mxu0 0.0
    %1713 = vmatpush1.msra.mxu0 0.0
    %1714 = vmatprep.subr.mxu0 0.0
    %1715 = vmatpush1.msra.mxu0 0.0
    %1716 = vmatprep.subr.mxu0 0.0
    %1717 = vmatpush1.msra.mxu0 0.0
    %1718 = vmatprep.subr.mxu0 0.0
    %1719 = vmatpush1.msra.mxu0 0.0
    %1720 = vmatprep.subr.mxu0 0.0
    %1721 = vmatpush1.msra.mxu0 0.0
    %1722 = vmatprep.subr.mxu0 0.0
    %1723 = vmatpush1.msra.mxu0 0.0
    %1724 = vmatprep.subr.mxu0 0.0
    %1725 = vmatpush1.msra.mxu0 0.0
    %1726 = vmatprep.subr.mxu0 0.0
    %1727 = vmatpush1.msra.mxu0 0.0
    %1728 = vmatprep.subr.mxu0 0.0
    %1729 = vmatpush1.msra.mxu0 0.0
    %1730 = vmatprep.subr.mxu0 0.0
    %1731 = vmatpush1.msra.mxu0 0.0
    %1732 = vmatprep.subr.mxu0 0.0
    %1733 = vmatpush1.msra.mxu0 0.0
    %1734 = vmatprep.subr.mxu0 0.0
    %1735 = vmatpush1.msra.mxu0 0.0
    %1736 = vmatprep.subr.mxu0 0.0
    %1737 = vmatpush1.msra.mxu0 0.0
    %1738 = vmatprep.subr.mxu0 0.0
    %1739 = vmatpush1.msra.mxu0 0.0
    %1740 = vmatprep.subr.mxu0 0.0
    %1741 = vmatpush1.msra.mxu0 0.0
    %1742 = vmatprep.subr.mxu0 0.0
    %1743 = vmatpush1.msra.mxu0 0.0
    %1744 = vmatprep.subr.mxu0 0.0
    %1745 = vmatpush1.msra.mxu0 0.0
    %1746 = vmatprep.subr.mxu0 0.0
    %1747 = vmatpush1.msra.mxu0 0.0
    %1748 = vmatprep.subr.mxu0 0.0
    %1749 = vmatpush1.msra.mxu0 0.0
    %1750 = vmatprep.subr.mxu0 0.0
    %1751 = vmatpush1.msra.mxu0 0.0
    %1752 = vmatprep.subr.mxu0 0.0
    %1753 = vmatpush1.msra.mxu0 0.0
    %1754 = vmatprep.subr.mxu0 0.0
    %1755 = vmatpush1.msra.mxu0 0.0
    %1756 = vmatprep.mubr.f32.mxu0 0.0
    %1757 = vmatmul.mubr.f32.gmra.mrb[0].mxu0 %v1530
    %v1758 = vpop.f32.mrb[0].mxu0
    %v1759 = vadd.f32 0.0, %v1758
    %v1760 = vpop.f32.mrb[0].mxu0
    %v1761 = vadd.f32 0.0, %v1760
    %1762 = vdwg.mxu0
    %v1763 = vld [vmem:[%s9] sm:$0xf]
    %1765 = vset.pattern.permute.xlu0 0
    %1766 = vperm.xlu0 %1765, %v1763
    %v1767 = vpop.permute.xlu0 %1766
    %v1769 = vmul.f32 %v1617, %v1767
    %v1770 = vmul.f32 %v1619, %v1767
    %v1771 = vmul.f32 %v1688, %v1767
    %v1772 = vmul.f32 %v1690, %v1767
    %v1773 = vmul.f32 %v1759, %v1767
    %v1774 = vmul.f32 %v1761, %v1767
    %v1775 = vld [vmem:[%s10] sm:$0xf]
    %1777 = vset.pattern.permute.xlu0 0
    %1778 = vperm.xlu0 %1777, %v1775
    %v1779 = vpop.permute.xlu0 %1778
    %v1781 = vadd.f32 %v1769, %v1779
    %v1782 = vadd.f32 %v1770, %v1779
    %v1783 = vadd.f32 %v1771, %v1779
    %v1784 = vadd.f32 %v1772, %v1779
    %v1785 = vadd.f32 %v1773, %v1779
    %v1786 = vadd.f32 %v1774, %v1779
    %v1787 = vmax.f32 %v1781, 0.0
    %v1788 = vmax.f32 %v1782, 0.0
    %v1789 = vmax.f32 %v1783, 0.0
    %v1790 = vmax.f32 %v1784, 0.0
    %v1791 = vmax.f32 %v1785, 0.0
    %v1792 = vmax.f32 %v1786, 0.0
    %v1799 = vcombine.low %v1787, %v1788
    %v1800 = vcombine.low %v1789, %v1790
    %v1801 = vcombine.low %v1791, %v1792
    %1805 = vst [vmem:[#allocation7] sm:$0xff] %v1799
    %1806 = vst [vmem:[#allocation7 + $0x8] sm:$0xff] %v1800
    %1807 = vst.msk [vmem:[#allocation7 + $0x10] sm:$0xff] %vm1167, %v1801
    // Predicated region
    $region50: #{tpu_custom_call.1} parent=1 // pred_check
      _
    $region51: #{tpu_custom_call.1} parent=1 // pred_check_branch
      %1809 = sbr.rel (0) target = $region53
    $region52: #{tpu_custom_call.1} parent=1 // pred_region
      %s1811 = ssub.s32 384, 384
      %1812 = vsyncadd [#allocation8], %s1811
      %s1814 = sshll.u32 [#allocation7], 4
      %s1815 = int_to_ptr.vmem [resolvable:$true] %s1814
      %1817 = dma.vmem_to_hbm [thread:$0]  %s1815, 384, %s12, [#allocation8]
    $region53: #{tpu_custom_call.1} parent=1 // pred_fallthru
      _
    // Predicated region
    $region54: #{tpu_custom_call.1} parent=1 // pred_check
      _
    $region55: #{tpu_custom_call.1} parent=1 // pred_check_branch
      %1819 = sbr.rel (0) target = $region57
    $region56: #{tpu_custom_call.1} parent=1 // pred_region
      %1820 = dma.done [#allocation8], 384
    $region57: #{tpu_custom_call.1} parent=1 // pred_fallthru
      _
    %1821 = vsyncpa [#allocation8], 1

</llo_original>
